<compile_context>
chip_gen: v7x
topology: tpu7x:2x2x1
jax: 0.10.0
libtpu: 0.0.40
codegen_flags: <defaults>
</compile_context>

<pallas_src>
import jax
import jax.numpy as jnp
from jax import lax
from jax.experimental import pallas as pl
from jax.experimental.pallas import tpu as pltpu


def _round_up(x, m):
    return (x + m - 1) // m * m


def _make_rnn_kernel(Hp, TT, T_real, T_pad):
    """Kernel factory. Hp/TT/T_real/T_pad are static Python ints."""
    needs_freeze = (T_pad != T_real)

    def kernel(x_ref, wx_ref, whh_ref, b_ref, h0_ref,
               out_ref, hfin_ref, h_scr):
        tb = pl.program_id(1)              # time-block index (inner, arbitrary)

        # Load the initial hidden state for this batch tile once.
        @pl.when(tb == 0)
        def _():
            h_scr[...] = h0_ref[...]

        w_dtype = wx_ref.dtype
        btile = x_ref.shape[1]
        N = wx_ref.shape[1]

        wx = wx_ref[...]                   # (I,  N) resident
        whh = whh_ref[...]                 # (Hp, N) resident
        # Hoist the bias broadcast out of the unrolled time loop.
        b = jnp.broadcast_to(b_ref[...].astype(jnp.float32), (btile, N))

        def step(t, h):
            x = x_ref[t]                   # (btile, I) f32
            # Fused GEMM: y = x @ Wx + h @ Whh + b  -> (btile, Hp + Op), f32.
            y = jnp.dot(x.astype(w_dtype), wx,
                        preferred_element_type=jnp.float32)
            y = y + jnp.dot(h.astype(w_dtype), whh,
                            preferred_element_type=jnp.float32)
            y = y + b

            h_new = y[:, :Hp]              # cols [0:H] valid, [H:Hp] stay 0
            logits = y[:, Hp:]             # padded lanes already at -1e30 (bias)

            # Numerically stable LogSoftmax along dim=1 (f32, v5e-safe).
            m = jnp.max(logits, axis=-1, keepdims=True)
            shifted = logits - m
            lse = jnp.log(jnp.sum(jnp.exp(shifted), axis=-1, keepdims=True))
            out_ref[t] = shifted - lse

            if needs_freeze:
                # Freeze the carry for padded timesteps (g >= T_real).
                g = tb * TT + t
                h_new = jnp.where(g < T_real, h_new, h)
            return h_new

        h_last = lax.fori_loop(0, TT, step, h_scr[...], unroll=True)
        h_scr[...] = h_last                # carry to the next time block

        @pl.when(tb == pl.num_programs(1) - 1)
        def _():
            hfin_ref[...] = h_last

    return kernel


def rnn_forward_sequence(x_seq, h0, wh, bh, wo, bo, *,
                         time_block=16, weight_dtype=None):
    """Run the RNN cell over a whole sequence in one pallas_call.

    x_seq: (T, B, I)   h0: (B, H)
    wh: (I+H, H), bh: (1, H)     -- i2h weight stored (in, out)
    wo: (I+H, O), bo: (1, O)     -- i2o weight stored (in, out)
    Returns (log_probs: (T, B, O), h_final: (B, H)).
    """
    T, B, I = x_seq.shape
    H = wh.shape[1]
    O = wo.shape[1]
    assert wh.shape[0] == I + H and wo.shape[0] == I + H

    # Lane-dense padded sizes for the fused output axis.
    Hp = _round_up(H, 128)
    Op = _round_up(O, 128)
    N = Hp + Op

    # Batch tiling: sublane-pad, tile at <=128 rows (parallel grid axis).
    Bp = _round_up(B, 8)
    if Bp > 128:
        Bp = _round_up(Bp, 128)
        btile = 128
    else:
        btile = Bp

    # Time blocking: TT steps per grid step; pad T up to a multiple of TT.
    TT = max(1, min(int(time_block), T))
    Tp = _round_up(T, TT)

    w_dtype = wh.dtype if weight_dtype is None else jnp.dtype(weight_dtype)

    # Fused weights. Columns [0:H] -> hidden head, [Hp:Hp+O] -> logits.
    # Input (K) dim of wx is left unpadded (full-extent dims are exempt).
    wx = jnp.zeros((I, N), w_dtype)
    wx = wx.at[:, :H].set(wh[:I].astype(w_dtype))
    wx = wx.at[:, Hp:Hp + O].set(wo[:I].astype(w_dtype))
    whh = jnp.zeros((Hp, N), w_dtype)
    whh = whh.at[:H, :H].set(wh[I:].astype(w_dtype))
    whh = whh.at[:H, Hp:Hp + O].set(wo[I:].astype(w_dtype))

    # Bias in f32; fold the padded-logit mask into the bias (-1e30 lanes).
    b = jnp.zeros((1, N), jnp.float32)
    b = b.at[:, :H].set(bh.astype(jnp.float32).reshape(1, H))
    b = b.at[:, Hp:Hp + O].set(bo.astype(jnp.float32).reshape(1, O))
    if Op != O:
        b = b.at[:, Hp + O:].set(jnp.float32(-1e30))

    # Pad only batch (sublane) and time (grid); feature dim stays I.
    x_pad = jnp.zeros((Tp, Bp, I), jnp.float32)
    x_pad = x_pad.at[:T, :B, :].set(x_seq.astype(jnp.float32))
    h0_pad = jnp.zeros((Bp, Hp), jnp.float32).at[:B, :H].set(
        h0.astype(jnp.float32))

    kernel = _make_rnn_kernel(Hp, TT, T, Tp)
    grid = (Bp // btile, Tp // TT)         # (batch tiles, time blocks)

    out_pad, hfin_pad = pl.pallas_call(
        kernel,
        grid=grid,
        in_specs=[
            # Per-time-block input slab.
            pl.BlockSpec((TT, btile, I), lambda bt, tb: (tb, bt, 0)),
            # Weights / bias: constant index_map -> VMEM-resident all call.
            pl.BlockSpec((I, N), lambda bt, tb: (0, 0)),
            pl.BlockSpec((Hp, N), lambda bt, tb: (0, 0)),
            pl.BlockSpec((1, N), lambda bt, tb: (0, 0)),
            # Initial hidden per batch tile.
            pl.BlockSpec((btile, Hp), lambda bt, tb: (bt, 0)),
        ],
        out_specs=(
            pl.BlockSpec((TT, btile, Op), lambda bt, tb: (tb, bt, 0)),
            pl.BlockSpec((btile, Hp), lambda bt, tb: (bt, 0)),
        ),
        out_shape=(
            jax.ShapeDtypeStruct((Tp, Bp, Op), jnp.float32),
            jax.ShapeDtypeStruct((Bp, Hp), jnp.float32),
        ),
        scratch_shapes=[pltpu.VMEM((btile, Hp), jnp.float32)],
        compiler_params=pltpu.CompilerParams(
            dimension_semantics=("parallel", "arbitrary"),
            vmem_limit_bytes=32 * 1024 * 1024),
    )(x_pad, wx, whh, b, h0_pad)

    return out_pad[:T, :B, :O], hfin_pad[:B, :H]


def rnn_forward(x, hidden, wh, bh, wo, bo):
    """Single-step forward matching the PyTorch module exactly:
    returns (log_softmax_output: (B, O), new_hidden: (B, H))."""
    out, h = rnn_forward_sequence(x[None], hidden, wh, bh, wo, bo)
    return out[0], h


def init_linear_params(key, in_features, out_features):
    """PyTorch nn.Linear default init: U(-1/sqrt(fan_in), 1/sqrt(fan_in)).
    Weight returned transposed: (in_features, out_features)."""
    kw, kb = jax.random.split(key)
    bound = 1.0 / jnp.sqrt(jnp.float32(in_features))
    w = jax.random.uniform(kw, (in_features, out_features), jnp.float32,
                           minval=-bound, maxval=bound)
    b = jax.random.uniform(kb, (1, out_features), jnp.float32,
                           minval=-bound, maxval=bound)
    return w, b


def _ref_cell(x, h, wh, bh, wo, bo):
    combined = jnp.concatenate([x, h], axis=1)
    hp = jax.lax.Precision.HIGHEST
    new_h = jnp.dot(combined, wh, precision=hp) + bh
    logits = jnp.dot(combined, wo, precision=hp) + bo
    return jax.nn.log_softmax(logits, axis=1), new_h


def _ref_sequence(x_seq, h0, wh, bh, wo, bo):
    h = h0
    outs = []
    for t in range(x_seq.shape[0]):
        o, h = _ref_cell(x_seq[t], h, wh, bh, wo, bo)
        outs.append(o)
    return jnp.stack(outs, axis=0), h


if __name__ == "__main__":
    batch = 2
    input_size = 16
    hidden_size = 32
    output_size = 8
    seq_len = 8

    key = jax.random.PRNGKey(0)
    k_x, k_i2h, k_i2o = jax.random.split(key, 3)

    x_seq = jax.random.normal(k_x, (seq_len, batch, input_size), jnp.float32)
    hidden0 = jnp.zeros((batch, hidden_size), jnp.float32)   # initHidden()

    wh, bh = init_linear_params(k_i2h, input_size + hidden_size, hidden_size)
    wo, bo = init_linear_params(k_i2o, input_size + hidden_size, output_size)

    # --- Full sequence in one kernel call (f32 weights, tight tolerance) ---
    outs, h_final = rnn_forward_sequence(x_seq, hidden0, wh, bh, wo, bo)
    jax.block_until_ready((outs, h_final))

    ref_outs, h_ref = _ref_sequence(x_seq, hidden0, wh, bh, wo, bo)
    assert jnp.allclose(outs, ref_outs, atol=1e-4, rtol=1e-4), "output mismatch"
    assert jnp.allclose(h_final, h_ref, atol=1e-4, rtol=1e-4), "hidden mismatch"

    # --- Single-step forward (exact PyTorch module signature) ---
    out1, h1 = rnn_forward(x_seq[0], hidden0, wh, bh, wo, bo)
    jax.block_until_ready((out1, h1))
    o_ref1, h_ref1 = _ref_cell(x_seq[0], hidden0, wh, bh, wo, bo)
    assert jnp.allclose(out1, o_ref1, atol=1e-4, rtol=1e-4), "step output mismatch"
    assert jnp.allclose(h1, h_ref1, atol=1e-4, rtol=1e-4), "step hidden mismatch"

    # --- Ragged T (exercises padded-timestep freeze: T=5, TT=4 -> Tp=8) ---
    outs5, h5 = rnn_forward_sequence(x_seq[:5], hidden0, wh, bh, wo, bo,
                                     time_block=4)
    jax.block_until_ready((outs5, h5))
    ref5, h_ref5 = _ref_sequence(x_seq[:5], hidden0, wh, bh, wo, bo)
    assert jnp.allclose(outs5, ref5, atol=1e-4, rtol=1e-4), "ragged output mismatch"
    assert jnp.allclose(h5, h_ref5, atol=1e-4, rtol=1e-4), "ragged hidden mismatch"

    # --- bf16 weights (v6e/v7x fast path), loose tolerance vs f32 reference ---
    outs_bf, h_bf = rnn_forward_sequence(x_seq, hidden0, wh, bh, wo, bo,
                                         weight_dtype=jnp.bfloat16)
    jax.block_until_ready((outs_bf, h_bf))
    assert jnp.allclose(outs_bf, ref_outs, atol=0.2), "bf16 output mismatch"
    assert jnp.allclose(h_bf, h_ref, atol=0.2), "bf16 hidden mismatch"

    print("KERNEL_OK")
</pallas_src>

<mosaic_0001>
module attributes {stable_mosaic.version = 11 : i64} {
  func.func @kernel(%arg0: i32, %arg1: i32, %arg2: memref<8x8x16xf32, #tpu.memory_space<vmem>>, %arg3: memref<16x256xf32, #tpu.memory_space<vmem>>, %arg4: memref<128x256xf32, #tpu.memory_space<vmem>>, %arg5: memref<1x256xf32, #tpu.memory_space<vmem>>, %arg6: memref<8x128xf32, #tpu.memory_space<vmem>>, %arg7: memref<8x8x128xf32, #tpu.memory_space<vmem>>, %arg8: memref<8x128xf32, #tpu.memory_space<vmem>>, %arg9: memref<8x128xf32, #tpu.memory_space<vmem>>) attributes {dimension_semantics = [#tpu.dimension_semantics<parallel>, #tpu.dimension_semantics<arbitrary>], iteration_bounds = array<i64: 1, 1>, scalar_prefetch = 0 : i64, scratch_operands = 1 : i64, tpu.core_type = #tpu.core_type<tc>, window_params = [{transform_indices = @transform_0, window_bounds = array<i64: 8, 8, 16>}, {pipeline_mode = #tpu.pipeline_mode<synchronous>, transform_indices = @transform_1, window_bounds = array<i64: 16, 256>}, {pipeline_mode = #tpu.pipeline_mode<synchronous>, transform_indices = @transform_2, window_bounds = array<i64: 128, 256>}, {pipeline_mode = #tpu.pipeline_mode<synchronous>, transform_indices = @transform_3, window_bounds = array<i64: 1, 256>}, {transform_indices = @transform_4, window_bounds = array<i64: 8, 128>}, {transform_indices = @transform_5, window_bounds = array<i64: 8, 8, 128>}, {transform_indices = @transform_6, window_bounds = array<i64: 8, 128>}]} {
    %c0_i32 = arith.constant 0 : i32
    %0 = arith.cmpi eq, %arg1, %c0_i32 : i32
    %1 = arith.extui %0 : i1 to i32
    %c0_i32_0 = arith.constant 0 : i32
    %2 = arith.cmpi ne, %1, %c0_i32_0 : i32
    scf.if %2 {
      %c0_76 = arith.constant 0 : index
      %c0_77 = arith.constant 0 : index
      %197 = vector.load %arg6[%c0_76, %c0_77] : memref<8x128xf32, #tpu.memory_space<vmem>>, vector<8x128xf32>
      %c0_78 = arith.constant 0 : index
      %c0_79 = arith.constant 0 : index
      %198 = vector.load %arg9[%c0_78, %c0_79] : memref<8x128xf32, #tpu.memory_space<vmem>>, vector<8x128xf32>
      tpu.vector_store %arg9[%c0_78, %c0_79], %197 {strides = array<i32>} : memref<8x128xf32, #tpu.memory_space<vmem>>, vector<8x128xf32>,
    } else {
    }
    %c0 = arith.constant 0 : index
    %c0_1 = arith.constant 0 : index
    %3 = vector.load %arg3[%c0, %c0_1] : memref<16x256xf32, #tpu.memory_space<vmem>>, vector<16x256xf32>
    %c0_2 = arith.constant 0 : index
    %c0_3 = arith.constant 0 : index
    %4 = vector.load %arg4[%c0_2, %c0_3] : memref<128x256xf32, #tpu.memory_space<vmem>>, vector<128x256xf32>
    %c0_4 = arith.constant 0 : index
    %c0_5 = arith.constant 0 : index
    %5 = vector.load %arg5[%c0_4, %c0_5] : memref<1x256xf32, #tpu.memory_space<vmem>>, vector<1x256xf32>
    %6 = vector.shape_cast %5 : vector<1x256xf32> to vector<1x256xf32>
    %7 = vector.broadcast %6 : vector<1x256xf32> to vector<8x256xf32>
    %c0_6 = arith.constant 0 : index
    %c0_7 = arith.constant 0 : index
    %8 = vector.load %arg9[%c0_6, %c0_7] : memref<8x128xf32, #tpu.memory_space<vmem>>, vector<8x128xf32>
    %c0_i32_8 = arith.constant 0 : i32
    %9 = arith.index_cast %c0_i32_8 : i32 to index
    %c0_9 = arith.constant 0 : index
    %c0_10 = arith.constant 0 : index
    %10 = vector.load %arg2[%9, %c0_9, %c0_10] : memref<8x8x16xf32, #tpu.memory_space<vmem>>, vector<1x8x16xf32>
    %11 = vector.shape_cast %10 : vector<1x8x16xf32> to vector<8x16xf32>
    %cst = arith.constant dense<0.000000e+00> : vector<8x256xf32>
    %12 = tpu.matmul %11, %3, %cst {dimension_numbers = #tpu.dot_dimension_numbers<[1], [0], [0], [1], [0, 0, 1, 1], [], []>} : vector<8x16xf32>, vector<16x256xf32>, vector<8x256xf32> -> vector<8x256xf32>
    %cst_11 = arith.constant dense<0.000000e+00> : vector<8x256xf32>
    %13 = tpu.matmul %8, %4, %cst_11 {dimension_numbers = #tpu.dot_dimension_numbers<[1], [0], [0], [1], [0, 0, 1, 1], [], []>} : vector<8x128xf32>, vector<128x256xf32>, vector<8x256xf32> -> vector<8x256xf32>
    %14 = arith.addf %12, %13 : vector<8x256xf32>
    %15 = arith.addf %14, %7 : vector<8x256xf32>
    %16 = vector.extract_strided_slice %15 {offsets = [0, 0], sizes = [8, 128], strides = [1, 1]} : vector<8x256xf32> to vector<8x128xf32>
    %17 = vector.extract_strided_slice %15 {offsets = [0, 128], sizes = [8, 128], strides = [1, 1]} : vector<8x256xf32> to vector<8x128xf32>
    %cst_12 = arith.constant dense<0xFF800000> : vector<8xf32>
    %18 = vector.multi_reduction <maximumf>, %17, %cst_12 [1] : vector<8x128xf32> to vector<8xf32>
    %19 = vector.shape_cast %18 : vector<8xf32> to vector<8x1xf32>
    %20 = vector.broadcast %19 : vector<8x1xf32> to vector<8x128xf32>
    %21 = arith.subf %17, %20 : vector<8x128xf32>
    %22 = math.exp %21 : vector<8x128xf32>
    %cst_13 = arith.constant dense<0.000000e+00> : vector<8xf32>
    %23 = vector.multi_reduction <add>, %22, %cst_13 [1] : vector<8x128xf32> to vector<8xf32>
    %24 = vector.shape_cast %23 : vector<8xf32> to vector<8x1xf32>
    %25 = math.log %24 : vector<8x1xf32>
    %26 = vector.broadcast %25 : vector<8x1xf32> to vector<8x128xf32>
    %27 = arith.subf %21, %26 : vector<8x128xf32>
    %28 = arith.index_cast %c0_i32_8 : i32 to index
    %c0_14 = arith.constant 0 : index
    %c0_15 = arith.constant 0 : index
    %29 = vector.load %arg7[%28, %c0_14, %c0_15] : memref<8x8x128xf32, #tpu.memory_space<vmem>>, vector<1x8x128xf32>
    %30 = vector.shape_cast %29 : vector<1x8x128xf32> to vector<8x128xf32>
    %31 = vector.shape_cast %27 : vector<8x128xf32> to vector<1x8x128xf32>
    tpu.vector_store %arg7[%28, %c0_14, %c0_15], %31 {strides = array<i32>} : memref<8x8x128xf32, #tpu.memory_space<vmem>>, vector<1x8x128xf32>,
    %c1_i32 = arith.constant 1 : i32
    %32 = arith.index_cast %c1_i32 : i32 to index
    %c0_16 = arith.constant 0 : index
    %c0_17 = arith.constant 0 : index
    %33 = vector.load %arg2[%32, %c0_16, %c0_17] : memref<8x8x16xf32, #tpu.memory_space<vmem>>, vector<1x8x16xf32>
    %34 = vector.shape_cast %33 : vector<1x8x16xf32> to vector<8x16xf32>
    %cst_18 = arith.constant dense<0.000000e+00> : vector<8x256xf32>
    %35 = tpu.matmul %34, %3, %cst_18 {dimension_numbers = #tpu.dot_dimension_numbers<[1], [0], [0], [1], [0, 0, 1, 1], [], []>} : vector<8x16xf32>, vector<16x256xf32>, vector<8x256xf32> -> vector<8x256xf32>
    %cst_19 = arith.constant dense<0.000000e+00> : vector<8x256xf32>
    %36 = tpu.matmul %16, %4, %cst_19 {dimension_numbers = #tpu.dot_dimension_numbers<[1], [0], [0], [1], [0, 0, 1, 1], [], []>} : vector<8x128xf32>, vector<128x256xf32>, vector<8x256xf32> -> vector<8x256xf32>
    %37 = arith.addf %35, %36 : vector<8x256xf32>
    %38 = arith.addf %37, %7 : vector<8x256xf32>
    %39 = vector.extract_strided_slice %38 {offsets = [0, 0], sizes = [8, 128], strides = [1, 1]} : vector<8x256xf32> to vector<8x128xf32>
    %40 = vector.extract_strided_slice %38 {offsets = [0, 128], sizes = [8, 128], strides = [1, 1]} : vector<8x256xf32> to vector<8x128xf32>
    %cst_20 = arith.constant dense<0xFF800000> : vector<8xf32>
    %41 = vector.multi_reduction <maximumf>, %40, %cst_20 [1] : vector<8x128xf32> to vector<8xf32>
    %42 = vector.shape_cast %41 : vector<8xf32> to vector<8x1xf32>
    %43 = vector.broadcast %42 : vector<8x1xf32> to vector<8x128xf32>
    %44 = arith.subf %40, %43 : vector<8x128xf32>
    %45 = math.exp %44 : vector<8x128xf32>
    %cst_21 = arith.constant dense<0.000000e+00> : vector<8xf32>
    %46 = vector.multi_reduction <add>, %45, %cst_21 [1] : vector<8x128xf32> to vector<8xf32>
    %47 = vector.shape_cast %46 : vector<8xf32> to vector<8x1xf32>
    %48 = math.log %47 : vector<8x1xf32>
    %49 = vector.broadcast %48 : vector<8x1xf32> to vector<8x128xf32>
    %50 = arith.subf %44, %49 : vector<8x128xf32>
    %51 = arith.index_cast %c1_i32 : i32 to index
    %c0_22 = arith.constant 0 : index
    %c0_23 = arith.constant 0 : index
    %52 = vector.load %arg7[%51, %c0_22, %c0_23] : memref<8x8x128xf32, #tpu.memory_space<vmem>>, vector<1x8x128xf32>
    %53 = vector.shape_cast %52 : vector<1x8x128xf32> to vector<8x128xf32>
    %54 = vector.shape_cast %50 : vector<8x128xf32> to vector<1x8x128xf32>
    tpu.vector_store %arg7[%51, %c0_22, %c0_23], %54 {strides = array<i32>} : memref<8x8x128xf32, #tpu.memory_space<vmem>>, vector<1x8x128xf32>,
    %c2_i32 = arith.constant 2 : i32
    %55 = arith.index_cast %c2_i32 : i32 to index
    %c0_24 = arith.constant 0 : index
    %c0_25 = arith.constant 0 : index
    %56 = vector.load %arg2[%55, %c0_24, %c0_25] : memref<8x8x16xf32, #tpu.memory_space<vmem>>, vector<1x8x16xf32>
    %57 = vector.shape_cast %56 : vector<1x8x16xf32> to vector<8x16xf32>
    %cst_26 = arith.constant dense<0.000000e+00> : vector<8x256xf32>
    %58 = tpu.matmul %57, %3, %cst_26 {dimension_numbers = #tpu.dot_dimension_numbers<[1], [0], [0], [1], [0, 0, 1, 1], [], []>} : vector<8x16xf32>, vector<16x256xf32>, vector<8x256xf32> -> vector<8x256xf32>
    %cst_27 = arith.constant dense<0.000000e+00> : vector<8x256xf32>
    %59 = tpu.matmul %39, %4, %cst_27 {dimension_numbers = #tpu.dot_dimension_numbers<[1], [0], [0], [1], [0, 0, 1, 1], [], []>} : vector<8x128xf32>, vector<128x256xf32>, vector<8x256xf32> -> vector<8x256xf32>
    %60 = arith.addf %58, %59 : vector<8x256xf32>
    %61 = arith.addf %60, %7 : vector<8x256xf32>
    %62 = vector.extract_strided_slice %61 {offsets = [0, 0], sizes = [8, 128], strides = [1, 1]} : vector<8x256xf32> to vector<8x128xf32>
    %63 = vector.extract_strided_slice %61 {offsets = [0, 128], sizes = [8, 128], strides = [1, 1]} : vector<8x256xf32> to vector<8x128xf32>
    %cst_28 = arith.constant dense<0xFF800000> : vector<8xf32>
    %64 = vector.multi_reduction <maximumf>, %63, %cst_28 [1] : vector<8x128xf32> to vector<8xf32>
    %65 = vector.shape_cast %64 : vector<8xf32> to vector<8x1xf32>
    %66 = vector.broadcast %65 : vector<8x1xf32> to vector<8x128xf32>
    %67 = arith.subf %63, %66 : vector<8x128xf32>
    %68 = math.exp %67 : vector<8x128xf32>
    %cst_29 = arith.constant dense<0.000000e+00> : vector<8xf32>
    %69 = vector.multi_reduction <add>, %68, %cst_29 [1] : vector<8x128xf32> to vector<8xf32>
    %70 = vector.shape_cast %69 : vector<8xf32> to vector<8x1xf32>
    %71 = math.log %70 : vector<8x1xf32>
    %72 = vector.broadcast %71 : vector<8x1xf32> to vector<8x128xf32>
    %73 = arith.subf %67, %72 : vector<8x128xf32>
    %74 = arith.index_cast %c2_i32 : i32 to index
    %c0_30 = arith.constant 0 : index
    %c0_31 = arith.constant 0 : index
    %75 = vector.load %arg7[%74, %c0_30, %c0_31] : memref<8x8x128xf32, #tpu.memory_space<vmem>>, vector<1x8x128xf32>
    %76 = vector.shape_cast %75 : vector<1x8x128xf32> to vector<8x128xf32>
    %77 = vector.shape_cast %73 : vector<8x128xf32> to vector<1x8x128xf32>
    tpu.vector_store %arg7[%74, %c0_30, %c0_31], %77 {strides = array<i32>} : memref<8x8x128xf32, #tpu.memory_space<vmem>>, vector<1x8x128xf32>,
    %c3_i32 = arith.constant 3 : i32
    %78 = arith.index_cast %c3_i32 : i32 to index
    %c0_32 = arith.constant 0 : index
    %c0_33 = arith.constant 0 : index
    %79 = vector.load %arg2[%78, %c0_32, %c0_33] : memref<8x8x16xf32, #tpu.memory_space<vmem>>, vector<1x8x16xf32>
    %80 = vector.shape_cast %79 : vector<1x8x16xf32> to vector<8x16xf32>
    %cst_34 = arith.constant dense<0.000000e+00> : vector<8x256xf32>
    %81 = tpu.matmul %80, %3, %cst_34 {dimension_numbers = #tpu.dot_dimension_numbers<[1], [0], [0], [1], [0, 0, 1, 1], [], []>} : vector<8x16xf32>, vector<16x256xf32>, vector<8x256xf32> -> vector<8x256xf32>
    %cst_35 = arith.constant dense<0.000000e+00> : vector<8x256xf32>
    %82 = tpu.matmul %62, %4, %cst_35 {dimension_numbers = #tpu.dot_dimension_numbers<[1], [0], [0], [1], [0, 0, 1, 1], [], []>} : vector<8x128xf32>, vector<128x256xf32>, vector<8x256xf32> -> vector<8x256xf32>
    %83 = arith.addf %81, %82 : vector<8x256xf32>
    %84 = arith.addf %83, %7 : vector<8x256xf32>
    %85 = vector.extract_strided_slice %84 {offsets = [0, 0], sizes = [8, 128], strides = [1, 1]} : vector<8x256xf32> to vector<8x128xf32>
    %86 = vector.extract_strided_slice %84 {offsets = [0, 128], sizes = [8, 128], strides = [1, 1]} : vector<8x256xf32> to vector<8x128xf32>
    %cst_36 = arith.constant dense<0xFF800000> : vector<8xf32>
    %87 = vector.multi_reduction <maximumf>, %86, %cst_36 [1] : vector<8x128xf32> to vector<8xf32>
    %88 = vector.shape_cast %87 : vector<8xf32> to vector<8x1xf32>
    %89 = vector.broadcast %88 : vector<8x1xf32> to vector<8x128xf32>
    %90 = arith.subf %86, %89 : vector<8x128xf32>
    %91 = math.exp %90 : vector<8x128xf32>
    %cst_37 = arith.constant dense<0.000000e+00> : vector<8xf32>
    %92 = vector.multi_reduction <add>, %91, %cst_37 [1] : vector<8x128xf32> to vector<8xf32>
    %93 = vector.shape_cast %92 : vector<8xf32> to vector<8x1xf32>
    %94 = math.log %93 : vector<8x1xf32>
    %95 = vector.broadcast %94 : vector<8x1xf32> to vector<8x128xf32>
    %96 = arith.subf %90, %95 : vector<8x128xf32>
    %97 = arith.index_cast %c3_i32 : i32 to index
    %c0_38 = arith.constant 0 : index
    %c0_39 = arith.constant 0 : index
    %98 = vector.load %arg7[%97, %c0_38, %c0_39] : memref<8x8x128xf32, #tpu.memory_space<vmem>>, vector<1x8x128xf32>
    %99 = vector.shape_cast %98 : vector<1x8x128xf32> to vector<8x128xf32>
    %100 = vector.shape_cast %96 : vector<8x128xf32> to vector<1x8x128xf32>
    tpu.vector_store %arg7[%97, %c0_38, %c0_39], %100 {strides = array<i32>} : memref<8x8x128xf32, #tpu.memory_space<vmem>>, vector<1x8x128xf32>,
    %c4_i32 = arith.constant 4 : i32
    %101 = arith.index_cast %c4_i32 : i32 to index
    %c0_40 = arith.constant 0 : index
    %c0_41 = arith.constant 0 : index
    %102 = vector.load %arg2[%101, %c0_40, %c0_41] : memref<8x8x16xf32, #tpu.memory_space<vmem>>, vector<1x8x16xf32>
    %103 = vector.shape_cast %102 : vector<1x8x16xf32> to vector<8x16xf32>
    %cst_42 = arith.constant dense<0.000000e+00> : vector<8x256xf32>
    %104 = tpu.matmul %103, %3, %cst_42 {dimension_numbers = #tpu.dot_dimension_numbers<[1], [0], [0], [1], [0, 0, 1, 1], [], []>} : vector<8x16xf32>, vector<16x256xf32>, vector<8x256xf32> -> vector<8x256xf32>
    %cst_43 = arith.constant dense<0.000000e+00> : vector<8x256xf32>
    %105 = tpu.matmul %85, %4, %cst_43 {dimension_numbers = #tpu.dot_dimension_numbers<[1], [0], [0], [1], [0, 0, 1, 1], [], []>} : vector<8x128xf32>, vector<128x256xf32>, vector<8x256xf32> -> vector<8x256xf32>
    %106 = arith.addf %104, %105 : vector<8x256xf32>
    %107 = arith.addf %106, %7 : vector<8x256xf32>
    %108 = vector.extract_strided_slice %107 {offsets = [0, 0], sizes = [8, 128], strides = [1, 1]} : vector<8x256xf32> to vector<8x128xf32>
    %109 = vector.extract_strided_slice %107 {offsets = [0, 128], sizes = [8, 128], strides = [1, 1]} : vector<8x256xf32> to vector<8x128xf32>
    %cst_44 = arith.constant dense<0xFF800000> : vector<8xf32>
    %110 = vector.multi_reduction <maximumf>, %109, %cst_44 [1] : vector<8x128xf32> to vector<8xf32>
    %111 = vector.shape_cast %110 : vector<8xf32> to vector<8x1xf32>
    %112 = vector.broadcast %111 : vector<8x1xf32> to vector<8x128xf32>
    %113 = arith.subf %109, %112 : vector<8x128xf32>
    %114 = math.exp %113 : vector<8x128xf32>
    %cst_45 = arith.constant dense<0.000000e+00> : vector<8xf32>
    %115 = vector.multi_reduction <add>, %114, %cst_45 [1] : vector<8x128xf32> to vector<8xf32>
    %116 = vector.shape_cast %115 : vector<8xf32> to vector<8x1xf32>
    %117 = math.log %116 : vector<8x1xf32>
    %118 = vector.broadcast %117 : vector<8x1xf32> to vector<8x128xf32>
    %119 = arith.subf %113, %118 : vector<8x128xf32>
    %120 = arith.index_cast %c4_i32 : i32 to index
    %c0_46 = arith.constant 0 : index
    %c0_47 = arith.constant 0 : index
    %121 = vector.load %arg7[%120, %c0_46, %c0_47] : memref<8x8x128xf32, #tpu.memory_space<vmem>>, vector<1x8x128xf32>
    %122 = vector.shape_cast %121 : vector<1x8x128xf32> to vector<8x128xf32>
    %123 = vector.shape_cast %119 : vector<8x128xf32> to vector<1x8x128xf32>
    tpu.vector_store %arg7[%120, %c0_46, %c0_47], %123 {strides = array<i32>} : memref<8x8x128xf32, #tpu.memory_space<vmem>>, vector<1x8x128xf32>,
    %c5_i32 = arith.constant 5 : i32
    %124 = arith.index_cast %c5_i32 : i32 to index
    %c0_48 = arith.constant 0 : index
    %c0_49 = arith.constant 0 : index
    %125 = vector.load %arg2[%124, %c0_48, %c0_49] : memref<8x8x16xf32, #tpu.memory_space<vmem>>, vector<1x8x16xf32>
    %126 = vector.shape_cast %125 : vector<1x8x16xf32> to vector<8x16xf32>
    %cst_50 = arith.constant dense<0.000000e+00> : vector<8x256xf32>
    %127 = tpu.matmul %126, %3, %cst_50 {dimension_numbers = #tpu.dot_dimension_numbers<[1], [0], [0], [1], [0, 0, 1, 1], [], []>} : vector<8x16xf32>, vector<16x256xf32>, vector<8x256xf32> -> vector<8x256xf32>
    %cst_51 = arith.constant dense<0.000000e+00> : vector<8x256xf32>
    %128 = tpu.matmul %108, %4, %cst_51 {dimension_numbers = #tpu.dot_dimension_numbers<[1], [0], [0], [1], [0, 0, 1, 1], [], []>} : vector<8x128xf32>, vector<128x256xf32>, vector<8x256xf32> -> vector<8x256xf32>
    %129 = arith.addf %127, %128 : vector<8x256xf32>
    %130 = arith.addf %129, %7 : vector<8x256xf32>
    %131 = vector.extract_strided_slice %130 {offsets = [0, 0], sizes = [8, 128], strides = [1, 1]} : vector<8x256xf32> to vector<8x128xf32>
    %132 = vector.extract_strided_slice %130 {offsets = [0, 128], sizes = [8, 128], strides = [1, 1]} : vector<8x256xf32> to vector<8x128xf32>
    %cst_52 = arith.constant dense<0xFF800000> : vector<8xf32>
    %133 = vector.multi_reduction <maximumf>, %132, %cst_52 [1] : vector<8x128xf32> to vector<8xf32>
    %134 = vector.shape_cast %133 : vector<8xf32> to vector<8x1xf32>
    %135 = vector.broadcast %134 : vector<8x1xf32> to vector<8x128xf32>
    %136 = arith.subf %132, %135 : vector<8x128xf32>
    %137 = math.exp %136 : vector<8x128xf32>
    %cst_53 = arith.constant dense<0.000000e+00> : vector<8xf32>
    %138 = vector.multi_reduction <add>, %137, %cst_53 [1] : vector<8x128xf32> to vector<8xf32>
    %139 = vector.shape_cast %138 : vector<8xf32> to vector<8x1xf32>
    %140 = math.log %139 : vector<8x1xf32>
    %141 = vector.broadcast %140 : vector<8x1xf32> to vector<8x128xf32>
    %142 = arith.subf %136, %141 : vector<8x128xf32>
    %143 = arith.index_cast %c5_i32 : i32 to index
    %c0_54 = arith.constant 0 : index
    %c0_55 = arith.constant 0 : index
    %144 = vector.load %arg7[%143, %c0_54, %c0_55] : memref<8x8x128xf32, #tpu.memory_space<vmem>>, vector<1x8x128xf32>
    %145 = vector.shape_cast %144 : vector<1x8x128xf32> to vector<8x128xf32>
    %146 = vector.shape_cast %142 : vector<8x128xf32> to vector<1x8x128xf32>
    tpu.vector_store %arg7[%143, %c0_54, %c0_55], %146 {strides = array<i32>} : memref<8x8x128xf32, #tpu.memory_space<vmem>>, vector<1x8x128xf32>,
    %c6_i32 = arith.constant 6 : i32
    %147 = arith.index_cast %c6_i32 : i32 to index
    %c0_56 = arith.constant 0 : index
    %c0_57 = arith.constant 0 : index
    %148 = vector.load %arg2[%147, %c0_56, %c0_57] : memref<8x8x16xf32, #tpu.memory_space<vmem>>, vector<1x8x16xf32>
    %149 = vector.shape_cast %148 : vector<1x8x16xf32> to vector<8x16xf32>
    %cst_58 = arith.constant dense<0.000000e+00> : vector<8x256xf32>
    %150 = tpu.matmul %149, %3, %cst_58 {dimension_numbers = #tpu.dot_dimension_numbers<[1], [0], [0], [1], [0, 0, 1, 1], [], []>} : vector<8x16xf32>, vector<16x256xf32>, vector<8x256xf32> -> vector<8x256xf32>
    %cst_59 = arith.constant dense<0.000000e+00> : vector<8x256xf32>
    %151 = tpu.matmul %131, %4, %cst_59 {dimension_numbers = #tpu.dot_dimension_numbers<[1], [0], [0], [1], [0, 0, 1, 1], [], []>} : vector<8x128xf32>, vector<128x256xf32>, vector<8x256xf32> -> vector<8x256xf32>
    %152 = arith.addf %150, %151 : vector<8x256xf32>
    %153 = arith.addf %152, %7 : vector<8x256xf32>
    %154 = vector.extract_strided_slice %153 {offsets = [0, 0], sizes = [8, 128], strides = [1, 1]} : vector<8x256xf32> to vector<8x128xf32>
    %155 = vector.extract_strided_slice %153 {offsets = [0, 128], sizes = [8, 128], strides = [1, 1]} : vector<8x256xf32> to vector<8x128xf32>
    %cst_60 = arith.constant dense<0xFF800000> : vector<8xf32>
    %156 = vector.multi_reduction <maximumf>, %155, %cst_60 [1] : vector<8x128xf32> to vector<8xf32>
    %157 = vector.shape_cast %156 : vector<8xf32> to vector<8x1xf32>
    %158 = vector.broadcast %157 : vector<8x1xf32> to vector<8x128xf32>
    %159 = arith.subf %155, %158 : vector<8x128xf32>
    %160 = math.exp %159 : vector<8x128xf32>
    %cst_61 = arith.constant dense<0.000000e+00> : vector<8xf32>
    %161 = vector.multi_reduction <add>, %160, %cst_61 [1] : vector<8x128xf32> to vector<8xf32>
    %162 = vector.shape_cast %161 : vector<8xf32> to vector<8x1xf32>
    %163 = math.log %162 : vector<8x1xf32>
    %164 = vector.broadcast %163 : vector<8x1xf32> to vector<8x128xf32>
    %165 = arith.subf %159, %164 : vector<8x128xf32>
    %166 = arith.index_cast %c6_i32 : i32 to index
    %c0_62 = arith.constant 0 : index
    %c0_63 = arith.constant 0 : index
    %167 = vector.load %arg7[%166, %c0_62, %c0_63] : memref<8x8x128xf32, #tpu.memory_space<vmem>>, vector<1x8x128xf32>
    %168 = vector.shape_cast %167 : vector<1x8x128xf32> to vector<8x128xf32>
    %169 = vector.shape_cast %165 : vector<8x128xf32> to vector<1x8x128xf32>
    tpu.vector_store %arg7[%166, %c0_62, %c0_63], %169 {strides = array<i32>} : memref<8x8x128xf32, #tpu.memory_space<vmem>>, vector<1x8x128xf32>,
    %c7_i32 = arith.constant 7 : i32
    %170 = arith.index_cast %c7_i32 : i32 to index
    %c0_64 = arith.constant 0 : index
    %c0_65 = arith.constant 0 : index
    %171 = vector.load %arg2[%170, %c0_64, %c0_65] : memref<8x8x16xf32, #tpu.memory_space<vmem>>, vector<1x8x16xf32>
    %172 = vector.shape_cast %171 : vector<1x8x16xf32> to vector<8x16xf32>
    %cst_66 = arith.constant dense<0.000000e+00> : vector<8x256xf32>
    %173 = tpu.matmul %172, %3, %cst_66 {dimension_numbers = #tpu.dot_dimension_numbers<[1], [0], [0], [1], [0, 0, 1, 1], [], []>} : vector<8x16xf32>, vector<16x256xf32>, vector<8x256xf32> -> vector<8x256xf32>
    %cst_67 = arith.constant dense<0.000000e+00> : vector<8x256xf32>
    %174 = tpu.matmul %154, %4, %cst_67 {dimension_numbers = #tpu.dot_dimension_numbers<[1], [0], [0], [1], [0, 0, 1, 1], [], []>} : vector<8x128xf32>, vector<128x256xf32>, vector<8x256xf32> -> vector<8x256xf32>
    %175 = arith.addf %173, %174 : vector<8x256xf32>
    %176 = arith.addf %175, %7 : vector<8x256xf32>
    %177 = vector.extract_strided_slice %176 {offsets = [0, 0], sizes = [8, 128], strides = [1, 1]} : vector<8x256xf32> to vector<8x128xf32>
    %178 = vector.extract_strided_slice %176 {offsets = [0, 128], sizes = [8, 128], strides = [1, 1]} : vector<8x256xf32> to vector<8x128xf32>
    %cst_68 = arith.constant dense<0xFF800000> : vector<8xf32>
    %179 = vector.multi_reduction <maximumf>, %178, %cst_68 [1] : vector<8x128xf32> to vector<8xf32>
    %180 = vector.shape_cast %179 : vector<8xf32> to vector<8x1xf32>
    %181 = vector.broadcast %180 : vector<8x1xf32> to vector<8x128xf32>
    %182 = arith.subf %178, %181 : vector<8x128xf32>
    %183 = math.exp %182 : vector<8x128xf32>
    %cst_69 = arith.constant dense<0.000000e+00> : vector<8xf32>
    %184 = vector.multi_reduction <add>, %183, %cst_69 [1] : vector<8x128xf32> to vector<8xf32>
    %185 = vector.shape_cast %184 : vector<8xf32> to vector<8x1xf32>
    %186 = math.log %185 : vector<8x1xf32>
    %187 = vector.broadcast %186 : vector<8x1xf32> to vector<8x128xf32>
    %188 = arith.subf %182, %187 : vector<8x128xf32>
    %189 = arith.index_cast %c7_i32 : i32 to index
    %c0_70 = arith.constant 0 : index
    %c0_71 = arith.constant 0 : index
    %190 = vector.load %arg7[%189, %c0_70, %c0_71] : memref<8x8x128xf32, #tpu.memory_space<vmem>>, vector<1x8x128xf32>
    %191 = vector.shape_cast %190 : vector<1x8x128xf32> to vector<8x128xf32>
    %192 = vector.shape_cast %188 : vector<8x128xf32> to vector<1x8x128xf32>
    tpu.vector_store %arg7[%189, %c0_70, %c0_71], %192 {strides = array<i32>} : memref<8x8x128xf32, #tpu.memory_space<vmem>>, vector<1x8x128xf32>,
    %c8_i32 = arith.constant 8 : i32
    %c0_72 = arith.constant 0 : index
    %c0_73 = arith.constant 0 : index
    %193 = vector.load %arg9[%c0_72, %c0_73] : memref<8x128xf32, #tpu.memory_space<vmem>>, vector<8x128xf32>
    tpu.vector_store %arg9[%c0_72, %c0_73], %177 {strides = array<i32>} : memref<8x128xf32, #tpu.memory_space<vmem>>, vector<8x128xf32>,
    %c0_i32_74 = arith.constant 0 : i32
    %194 = arith.cmpi eq, %arg1, %c0_i32_74 : i32
    %195 = arith.extui %194 : i1 to i32
    %c0_i32_75 = arith.constant 0 : i32
    %196 = arith.cmpi ne, %195, %c0_i32_75 : i32
    scf.if %196 {
      %c0_76 = arith.constant 0 : index
      %c0_77 = arith.constant 0 : index
      %197 = vector.load %arg8[%c0_76, %c0_77] : memref<8x128xf32, #tpu.memory_space<vmem>>, vector<8x128xf32>
      tpu.vector_store %arg8[%c0_76, %c0_77], %177 {strides = array<i32>} : memref<8x128xf32, #tpu.memory_space<vmem>>, vector<8x128xf32>,
    } else {
    }
    return
  }
  func.func @transform_0(%arg0: i32, %arg1: i32) -> (i32, i32, i32) {
    %c0_i32 = arith.constant 0 : i32
    %c0_i32_0 = arith.constant 0 : i32
    return %arg1, %arg0, %c0_i32 : i32, i32, i32
  }
  func.func @transform_1(%arg0: i32, %arg1: i32) -> (i32, i32) {
    %c0_i32 = arith.constant 0 : i32
    %c0_i32_0 = arith.constant 0 : i32
    %c0_i32_1 = arith.constant 0 : i32
    return %c0_i32, %c0_i32_0 : i32, i32
  }
  func.func @transform_2(%arg0: i32, %arg1: i32) -> (i32, i32) {
    %c0_i32 = arith.constant 0 : i32
    %c0_i32_0 = arith.constant 0 : i32
    %c0_i32_1 = arith.constant 0 : i32
    return %c0_i32, %c0_i32_0 : i32, i32
  }
  func.func @transform_3(%arg0: i32, %arg1: i32) -> (i32, i32) {
    %c0_i32 = arith.constant 0 : i32
    %c0_i32_0 = arith.constant 0 : i32
    %c0_i32_1 = arith.constant 0 : i32
    return %c0_i32, %c0_i32_0 : i32, i32
  }
  func.func @transform_4(%arg0: i32, %arg1: i32) -> (i32, i32) {
    %c0_i32 = arith.constant 0 : i32
    %c0_i32_0 = arith.constant 0 : i32
    return %arg0, %c0_i32 : i32, i32
  }
  func.func @transform_5(%arg0: i32, %arg1: i32) -> (i32, i32, i32) {
    %c0_i32 = arith.constant 0 : i32
    %c0_i32_0 = arith.constant 0 : i32
    return %arg1, %arg0, %c0_i32 : i32, i32, i32
  }
  func.func @transform_6(%arg0: i32, %arg1: i32) -> (i32, i32) {
    %c0_i32 = arith.constant 0 : i32
    %c0_i32_0 = arith.constant 0 : i32
    return %arg0, %c0_i32 : i32, i32
  }
}

</mosaic_0001>

<llo_original>
// kernel: tpu_custom_call.1
$region0: #{tpu_custom_call.1}
  #allocation0 [shape = 'u32[]', space=smem, size = 0x4, offset = 0x4, fixed_abs, tag = 'smem constant byte address 0x4 - core index']
  #allocation1 [shape = 'u32[144,128]{1,0:T(1,128)}', space=vmem, size = 0x12000, scoped, tag = 'internal scratch']
  #allocation2 [shape = 'f32[8,128]{1,0:T(8,128)}', space=vmem, size = 0x1000, scoped, tag = 'scratch operand']
  %s0 = inlined_call_operand.hbm [shape: f32[8,8,16], index: 0, kind: input, shape index: {}]
  %s1 = inlined_call_operand.hbm [shape: f32[16,256], index: 1, kind: input, shape index: {}]
  %s2 = inlined_call_operand.hbm [shape: f32[128,256], index: 2, kind: input, shape index: {}]
  %s3 = inlined_call_operand.vmem [shape: f32[1,256], index: 3, kind: input, shape index: {}]
  %s4 = inlined_call_operand.vmem [shape: f32[8,128], index: 4, kind: input, shape index: {}]
  %s5 = inlined_call_operand.hbm [shape: f32[8,8,128], index: 5, kind: output, shape index: {0}]
  %s6 = inlined_call_operand.hbm [shape: f32[8,128], index: 6, kind: output, shape index: {1}]
  %7 = xla_tuple %s5, %s6
  %s8 = sld [smem:[#allocation0]]
  $region58: #{tpu_custom_call.1} parent=0
    _
  %s10 = ssub.s32 1, %s8
  %s11 = scalar_select 0, %s10, %s8
  $region1: #{tpu_custom_call.1} parent=0
    #allocation3 [shape = 'u8[32768]{0}', space=vmem, size = 0x8000, scoped, tag = 'input window, operand 0, single buffered']
    #allocation4 [shape = 's32[1]{0}', space=sflag, size = 0x4, scoped, tag = 'scoped memory for tpu_custom_call.1']
    #allocation5 [shape = 's32[1]{0}', space=sflag, size = 0x4, scoped, tag = 'scoped memory for tpu_custom_call.1']
    #allocation6 [shape = 'u8[16384]{0}', space=vmem, size = 0x4000, scoped, tag = 'input window, operand 1, single buffered']
    #allocation7 [shape = 's32[1]{0}', space=sflag, size = 0x4, scoped, tag = 'scoped memory for tpu_custom_call.1']
    #allocation8 [shape = 'u8[131072]{0}', space=vmem, size = 0x20000, scoped, tag = 'input window, operand 2, single buffered']
    #allocation9 [shape = 'u8[32768]{0}', space=vmem, size = 0x8000, scoped, tag = 'output window, operand 0, single buffered']
    #allocation10 [shape = 'u8[4096]{0}', space=vmem, size = 0x1000, scoped, tag = 'output window, operand 1, single buffered']
    #allocation11 [shape = 's32[1]{0}', space=sflag, size = 0x4, scoped, tag = 'scoped memory for tpu_custom_call.1']
    %12 = vsyncpa [#allocation4], 0
    %13 = vsyncpa [#allocation7], 0
    %14 = vsyncpa [#allocation5], 0
    %15 = vsyncpa [#allocation11], 0
    // Predicated region
    $region2: #{tpu_custom_call.1} parent=1 // pred_check
      _
    $region3: #{tpu_custom_call.1} parent=1 // pred_check_branch
      %17 = sbr.rel (0) target = $region5
    $region4: #{tpu_custom_call.1} parent=1 // pred_region
      %s19 = ssub.s32 1024, 1024
      %20 = vsyncadd [#allocation4], %s19
      %s21 = sshll.u32 [#allocation3], 4
      %s22 = int_to_ptr.vmem [resolvable:$true] %s21
      %27 = dma.hbm_to_vmem [thread:$0]  %s0, 1024, %s22, [#allocation4], 128, 128, 8
    $region5: #{tpu_custom_call.1} parent=1 // pred_fallthru
      _
    // Predicated region
    $region6: #{tpu_custom_call.1} parent=1 // pred_check
      _
    $region7: #{tpu_custom_call.1} parent=1 // pred_check_branch
      %29 = sbr.rel (0) target = $region9
    $region8: #{tpu_custom_call.1} parent=1 // pred_region
      %s31 = ssub.s32 512, 512
      %32 = vsyncadd [#allocation7], %s31
      %s33 = sshll.u32 [#allocation6], 4
      %s34 = int_to_ptr.vmem [resolvable:$true] %s33
      %39 = dma.hbm_to_vmem [thread:$0]  %s1, 512, %s34, [#allocation7], 256, 256, 16
    $region9: #{tpu_custom_call.1} parent=1 // pred_fallthru
      _
    // Predicated region
    $region10: #{tpu_custom_call.1} parent=1 // pred_check
      _
    $region11: #{tpu_custom_call.1} parent=1 // pred_check_branch
      %41 = sbr.rel (0) target = $region13
    $region12: #{tpu_custom_call.1} parent=1 // pred_region
      %s43 = ssub.s32 4096, 4096
      %44 = vsyncadd [#allocation7], %s43
      %s45 = sshll.u32 [#allocation8], 4
      %s46 = int_to_ptr.vmem [resolvable:$true] %s45
      %51 = dma.hbm_to_vmem [thread:$0]  %s2, 4096, %s46, [#allocation7], 256, 256, 16
    $region13: #{tpu_custom_call.1} parent=1 // pred_fallthru
      _
    // Predicated region
    $region14: #{tpu_custom_call.1} parent=1 // pred_check
      _
    $region15: #{tpu_custom_call.1} parent=1 // pred_check_branch
      %53 = sbr.rel (0) target = $region17
    $region16: #{tpu_custom_call.1} parent=1 // pred_region
      _
    $region17: #{tpu_custom_call.1} parent=1 // pred_fallthru
      _
    // Predicated region
    $region18: #{tpu_custom_call.1} parent=1 // pred_check
      _
    $region19: #{tpu_custom_call.1} parent=1 // pred_check_branch
      %55 = sbr.rel (0) target = $region21
    $region20: #{tpu_custom_call.1} parent=1 // pred_region
      _
    $region21: #{tpu_custom_call.1} parent=1 // pred_fallthru
      _
    // Predicated region
    $region22: #{tpu_custom_call.1} parent=1 // pred_check
      _
    $region23: #{tpu_custom_call.1} parent=1 // pred_check_branch
      %57 = sbr.rel (0) target = $region25
    $region24: #{tpu_custom_call.1} parent=1 // pred_region
      %58 = dma.done [#allocation4], 1024
    $region25: #{tpu_custom_call.1} parent=1 // pred_fallthru
      _
    // Predicated region
    $region26: #{tpu_custom_call.1} parent=1 // pred_check
      _
    $region27: #{tpu_custom_call.1} parent=1 // pred_check_branch
      %60 = sbr.rel (0) target = $region29
    $region28: #{tpu_custom_call.1} parent=1 // pred_region
      %61 = dma.done [#allocation7], 512
    $region29: #{tpu_custom_call.1} parent=1 // pred_fallthru
      _
    // Predicated region
    $region30: #{tpu_custom_call.1} parent=1 // pred_check
      _
    $region31: #{tpu_custom_call.1} parent=1 // pred_check_branch
      %63 = sbr.rel (0) target = $region33
    $region32: #{tpu_custom_call.1} parent=1 // pred_region
      %64 = dma.done [#allocation7], 4096
    $region33: #{tpu_custom_call.1} parent=1 // pred_fallthru
      _
    %p65 = scmp.eq.s32.totalorder 0, 0
    // Predicated region
    $region34: #{tpu_custom_call.1} parent=1 // pred_check
      %p66 = pneg %p65
    $region35: #{tpu_custom_call.1} parent=1 // pred_check_branch
      %68 = sbr.rel (%p66) target = $region37
    $region36: #{tpu_custom_call.1} parent=1 // pred_region
      %v69 = vld [vmem:[%s4] sm:$0xff]
      %70 = vst [vmem:[#allocation2] sm:$0xff] %v69
    $region37: #{tpu_custom_call.1} parent=1 // pred_fallthru
      _
    %v71 = vld [vmem:[#allocation6] sm:$0xff]
    %v72 = vld [vmem:[#allocation6 + $0x8] sm:$0xff]
    %v73 = vld [vmem:[#allocation6 + $0x10] sm:$0xff]
    %v74 = vld [vmem:[#allocation6 + $0x18] sm:$0xff]
    %v75 = vld [vmem:[#allocation8] sm:$0xff]
    %v76 = vld [vmem:[#allocation8 + $0x8] sm:$0xff]
    %v77 = vld [vmem:[#allocation8 + $0x10] sm:$0xff]
    %v78 = vld [vmem:[#allocation8 + $0x18] sm:$0xff]
    %v79 = vld [vmem:[#allocation8 + $0x20] sm:$0xff]
    %v80 = vld [vmem:[#allocation8 + $0x28] sm:$0xff]
    %v81 = vld [vmem:[#allocation8 + $0x30] sm:$0xff]
    %v82 = vld [vmem:[#allocation8 + $0x38] sm:$0xff]
    %v83 = vld [vmem:[#allocation8 + $0x40] sm:$0xff]
    %v84 = vld [vmem:[#allocation8 + $0x48] sm:$0xff]
    %v85 = vld [vmem:[#allocation8 + $0x50] sm:$0xff]
    %v86 = vld [vmem:[#allocation8 + $0x58] sm:$0xff]
    %v87 = vld [vmem:[#allocation8 + $0x60] sm:$0xff]
    %v88 = vld [vmem:[#allocation8 + $0x68] sm:$0xff]
    %v89 = vld [vmem:[#allocation8 + $0x70] sm:$0xff]
    %v90 = vld [vmem:[#allocation8 + $0x78] sm:$0xff]
    %v91 = vld [vmem:[#allocation8 + $0x80] sm:$0xff]
    %v92 = vld [vmem:[#allocation8 + $0x88] sm:$0xff]
    %v93 = vld [vmem:[#allocation8 + $0x90] sm:$0xff]
    %v94 = vld [vmem:[#allocation8 + $0x98] sm:$0xff]
    %v95 = vld [vmem:[#allocation8 + $0xa0] sm:$0xff]
    %v96 = vld [vmem:[#allocation8 + $0xa8] sm:$0xff]
    %v97 = vld [vmem:[#allocation8 + $0xb0] sm:$0xff]
    %v98 = vld [vmem:[#allocation8 + $0xb8] sm:$0xff]
    %v99 = vld [vmem:[#allocation8 + $0xc0] sm:$0xff]
    %v100 = vld [vmem:[#allocation8 + $0xc8] sm:$0xff]
    %v101 = vld [vmem:[#allocation8 + $0xd0] sm:$0xff]
    %v102 = vld [vmem:[#allocation8 + $0xd8] sm:$0xff]
    %v103 = vld [vmem:[#allocation8 + $0xe0] sm:$0xff]
    %v104 = vld [vmem:[#allocation8 + $0xe8] sm:$0xff]
    %v105 = vld [vmem:[#allocation8 + $0xf0] sm:$0xff]
    %v106 = vld [vmem:[#allocation8 + $0xf8] sm:$0xff]
    %v107 = vld [vmem:[%s3] sm:$0x3]
    %v109 = vlaneseq
    %v110 = vshrl.u32 %v109, 7
    %v111 = vsub.s32 0, %v110
    %v112 = vrot.slane %v107, %v111
    %v113 = vlaneseq
    %v114 = vshrl.u32 %v113, 7
    %v115 = vsub.s32 1, %v114
    %v116 = vrot.slane %v107, %v115
    %v119 = vld [vmem:[#allocation2] sm:$0xff]
    %v120 = vld [vmem:[#allocation3] sm:$0xff]
    %121 = vmatprep.subr.mxu0 %v76
    %122 = vmatpush1.msra.mxu0 %v75
    %123 = vmatprep.subr.mxu0 %v78
    %124 = vmatpush1.msra.mxu0 %v77
    %125 = vmatprep.subr.mxu0 %v80
    %126 = vmatpush1.msra.mxu0 %v79
    %127 = vmatprep.subr.mxu0 %v82
    %128 = vmatpush1.msra.mxu0 %v81
    %129 = vmatprep.subr.mxu0 %v84
    %130 = vmatpush1.msra.mxu0 %v83
    %131 = vmatprep.subr.mxu0 %v86
    %132 = vmatpush1.msra.mxu0 %v85
    %133 = vmatprep.subr.mxu0 %v88
    %134 = vmatpush1.msra.mxu0 %v87
    %135 = vmatprep.subr.mxu0 %v90
    %136 = vmatpush1.msra.mxu0 %v89
    %137 = vmatprep.subr.mxu0 %v92
    %138 = vmatpush1.msra.mxu0 %v91
    %139 = vmatprep.subr.mxu0 %v94
    %140 = vmatpush1.msra.mxu0 %v93
    %141 = vmatprep.subr.mxu0 %v96
    %142 = vmatpush1.msra.mxu0 %v95
    %143 = vmatprep.subr.mxu0 %v98
    %144 = vmatpush1.msra.mxu0 %v97
    %145 = vmatprep.subr.mxu0 %v100
    %146 = vmatpush1.msra.mxu0 %v99
    %147 = vmatprep.subr.mxu0 %v102
    %148 = vmatpush1.msra.mxu0 %v101
    %149 = vmatprep.subr.mxu0 %v104
    %150 = vmatpush1.msra.mxu0 %v103
    %151 = vmatprep.subr.mxu0 %v106
    %152 = vmatpush1.msra.mxu0 %v105
    %153 = vmatprep.subr.mxu0 0.0
    %154 = vmatpush1.msra.mxu0 0.0
    %155 = vmatprep.subr.mxu0 0.0
    %156 = vmatpush1.msra.mxu0 0.0
    %157 = vmatprep.subr.mxu0 0.0
    %158 = vmatpush1.msra.mxu0 0.0
    %159 = vmatprep.subr.mxu0 0.0
    %160 = vmatpush1.msra.mxu0 0.0
    %161 = vmatprep.subr.mxu0 0.0
    %162 = vmatpush1.msra.mxu0 0.0
    %163 = vmatprep.subr.mxu0 0.0
    %164 = vmatpush1.msra.mxu0 0.0
    %165 = vmatprep.subr.mxu0 0.0
    %166 = vmatpush1.msra.mxu0 0.0
    %167 = vmatprep.subr.mxu0 0.0
    %168 = vmatpush1.msra.mxu0 0.0
    %169 = vmatprep.subr.mxu0 0.0
    %170 = vmatpush1.msra.mxu0 0.0
    %171 = vmatprep.subr.mxu0 0.0
    %172 = vmatpush1.msra.mxu0 0.0
    %173 = vmatprep.subr.mxu0 0.0
    %174 = vmatpush1.msra.mxu0 0.0
    %175 = vmatprep.subr.mxu0 0.0
    %176 = vmatpush1.msra.mxu0 0.0
    %177 = vmatprep.subr.mxu0 0.0
    %178 = vmatpush1.msra.mxu0 0.0
    %179 = vmatprep.subr.mxu0 0.0
    %180 = vmatpush1.msra.mxu0 0.0
    %181 = vmatprep.subr.mxu0 0.0
    %182 = vmatpush1.msra.mxu0 0.0
    %183 = vmatprep.subr.mxu0 0.0
    %184 = vmatpush1.msra.mxu0 0.0
    %185 = vmatprep.mubr.f32.mxu0 0.0
    %186 = vmatmul.mubr.f32.gmra.mrb[0].mxu0 %v119
    %v187 = vpop.f32.mrb[0].mxu0
    %v188 = vadd.f32 0.0, %v187
    %v189 = vpop.f32.mrb[0].mxu0
    %v190 = vadd.f32 0.0, %v189
    %191 = vdwg.mxu0
    %vm192 = vcmask 130048
    %v194 = vsel %vm192, %v120, 0
    %196 = vmatprep.subr.mxu0 %v72
    %197 = vmatpush1.msra.mxu0 %v71
    %198 = vmatprep.subr.mxu0 %v74
    %199 = vmatpush1.msra.mxu0 %v73
    %200 = vmatprep.subr.mxu0 0.0
    %201 = vmatpush1.msra.mxu0 0.0
    %202 = vmatprep.subr.mxu0 0.0
    %203 = vmatpush1.msra.mxu0 0.0
    %204 = vmatprep.subr.mxu0 0.0
    %205 = vmatpush1.msra.mxu0 0.0
    %206 = vmatprep.subr.mxu0 0.0
    %207 = vmatpush1.msra.mxu0 0.0
    %208 = vmatprep.subr.mxu0 0.0
    %209 = vmatpush1.msra.mxu0 0.0
    %210 = vmatprep.subr.mxu0 0.0
    %211 = vmatpush1.msra.mxu0 0.0
    %212 = vmatprep.subr.mxu0 0.0
    %213 = vmatpush1.msra.mxu0 0.0
    %214 = vmatprep.subr.mxu0 0.0
    %215 = vmatpush1.msra.mxu0 0.0
    %216 = vmatprep.subr.mxu0 0.0
    %217 = vmatpush1.msra.mxu0 0.0
    %218 = vmatprep.subr.mxu0 0.0
    %219 = vmatpush1.msra.mxu0 0.0
    %220 = vmatprep.subr.mxu0 0.0
    %221 = vmatpush1.msra.mxu0 0.0
    %222 = vmatprep.subr.mxu0 0.0
    %223 = vmatpush1.msra.mxu0 0.0
    %224 = vmatprep.subr.mxu0 0.0
    %225 = vmatpush1.msra.mxu0 0.0
    %226 = vmatprep.subr.mxu0 0.0
    %227 = vmatpush1.msra.mxu0 0.0
    %228 = vmatprep.subr.mxu0 0.0
    %229 = vmatpush1.msra.mxu0 0.0
    %230 = vmatprep.subr.mxu0 0.0
    %231 = vmatpush1.msra.mxu0 0.0
    %232 = vmatprep.subr.mxu0 0.0
    %233 = vmatpush1.msra.mxu0 0.0
    %234 = vmatprep.subr.mxu0 0.0
    %235 = vmatpush1.msra.mxu0 0.0
    %236 = vmatprep.subr.mxu0 0.0
    %237 = vmatpush1.msra.mxu0 0.0
    %238 = vmatprep.subr.mxu0 0.0
    %239 = vmatpush1.msra.mxu0 0.0
    %240 = vmatprep.subr.mxu0 0.0
    %241 = vmatpush1.msra.mxu0 0.0
    %242 = vmatprep.subr.mxu0 0.0
    %243 = vmatpush1.msra.mxu0 0.0
    %244 = vmatprep.subr.mxu0 0.0
    %245 = vmatpush1.msra.mxu0 0.0
    %246 = vmatprep.subr.mxu0 0.0
    %247 = vmatpush1.msra.mxu0 0.0
    %248 = vmatprep.subr.mxu0 0.0
    %249 = vmatpush1.msra.mxu0 0.0
    %250 = vmatprep.subr.mxu0 0.0
    %251 = vmatpush1.msra.mxu0 0.0
    %252 = vmatprep.subr.mxu0 0.0
    %253 = vmatpush1.msra.mxu0 0.0
    %254 = vmatprep.subr.mxu0 0.0
    %255 = vmatpush1.msra.mxu0 0.0
    %256 = vmatprep.subr.mxu0 0.0
    %257 = vmatpush1.msra.mxu0 0.0
    %258 = vmatprep.subr.mxu0 0.0
    %259 = vmatpush1.msra.mxu0 0.0
    %260 = vmatprep.mubr.f32.mxu0 0.0
    %261 = vmatmul.mubr.f32.gmra.mrb[0].mxu0 %v194
    %v262 = vpop.f32.mrb[0].mxu0
    %v263 = vadd.f32 %v188, %v262
    %v264 = vpop.f32.mrb[0].mxu0
    %v265 = vadd.f32 %v190, %v264
    %266 = vdwg.mxu0
    %v267 = vadd.f32 %v263, %v112
    %v268 = vadd.f32 %v265, %v116
    %269 = vmax.xlane.f32.xlu0 %v268
    %v270 = vpop.xlane.xlu0 %269
    %v271 = vsub.f32 %v268, %v270
    %v272 = vmul.f32 %v271, 1.442695
    %v273 = vpow.pop %v272
    %274 = vadd.xlane.f32.xlu0 %v273
    %v275 = vpop.xlane.xlu0 %274
    %v276 = vlog2.pop %v275
    %v277 = vmul.f32 %v276, 0.6931472
    %v278 = vsub.f32 %v271, %v277
    %279 = vst [vmem:[#allocation9] sm:$0xff] %v278
    %s280 = scalar_lea.vmem [#allocation3], 8
    %v281 = vld [vmem:[%s280] sm:$0xff]
    %282 = vmatprep.subr.mxu0 %v76
    %283 = vmatpush1.msra.mxu0 %v75
    %284 = vmatprep.subr.mxu0 %v78
    %285 = vmatpush1.msra.mxu0 %v77
    %286 = vmatprep.subr.mxu0 %v80
    %287 = vmatpush1.msra.mxu0 %v79
    %288 = vmatprep.subr.mxu0 %v82
    %289 = vmatpush1.msra.mxu0 %v81
    %290 = vmatprep.subr.mxu0 %v84
    %291 = vmatpush1.msra.mxu0 %v83
    %292 = vmatprep.subr.mxu0 %v86
    %293 = vmatpush1.msra.mxu0 %v85
    %294 = vmatprep.subr.mxu0 %v88
    %295 = vmatpush1.msra.mxu0 %v87
    %296 = vmatprep.subr.mxu0 %v90
    %297 = vmatpush1.msra.mxu0 %v89
    %298 = vmatprep.subr.mxu0 %v92
    %299 = vmatpush1.msra.mxu0 %v91
    %300 = vmatprep.subr.mxu0 %v94
    %301 = vmatpush1.msra.mxu0 %v93
    %302 = vmatprep.subr.mxu0 %v96
    %303 = vmatpush1.msra.mxu0 %v95
    %304 = vmatprep.subr.mxu0 %v98
    %305 = vmatpush1.msra.mxu0 %v97
    %306 = vmatprep.subr.mxu0 %v100
    %307 = vmatpush1.msra.mxu0 %v99
    %308 = vmatprep.subr.mxu0 %v102
    %309 = vmatpush1.msra.mxu0 %v101
    %310 = vmatprep.subr.mxu0 %v104
    %311 = vmatpush1.msra.mxu0 %v103
    %312 = vmatprep.subr.mxu0 %v106
    %313 = vmatpush1.msra.mxu0 %v105
    %314 = vmatprep.subr.mxu0 0.0
    %315 = vmatpush1.msra.mxu0 0.0
    %316 = vmatprep.subr.mxu0 0.0
    %317 = vmatpush1.msra.mxu0 0.0
    %318 = vmatprep.subr.mxu0 0.0
    %319 = vmatpush1.msra.mxu0 0.0
    %320 = vmatprep.subr.mxu0 0.0
    %321 = vmatpush1.msra.mxu0 0.0
    %322 = vmatprep.subr.mxu0 0.0
    %323 = vmatpush1.msra.mxu0 0.0
    %324 = vmatprep.subr.mxu0 0.0
    %325 = vmatpush1.msra.mxu0 0.0
    %326 = vmatprep.subr.mxu0 0.0
    %327 = vmatpush1.msra.mxu0 0.0
    %328 = vmatprep.subr.mxu0 0.0
    %329 = vmatpush1.msra.mxu0 0.0
    %330 = vmatprep.subr.mxu0 0.0
    %331 = vmatpush1.msra.mxu0 0.0
    %332 = vmatprep.subr.mxu0 0.0
    %333 = vmatpush1.msra.mxu0 0.0
    %334 = vmatprep.subr.mxu0 0.0
    %335 = vmatpush1.msra.mxu0 0.0
    %336 = vmatprep.subr.mxu0 0.0
    %337 = vmatpush1.msra.mxu0 0.0
    %338 = vmatprep.subr.mxu0 0.0
    %339 = vmatpush1.msra.mxu0 0.0
    %340 = vmatprep.subr.mxu0 0.0
    %341 = vmatpush1.msra.mxu0 0.0
    %342 = vmatprep.subr.mxu0 0.0
    %343 = vmatpush1.msra.mxu0 0.0
    %344 = vmatprep.subr.mxu0 0.0
    %345 = vmatpush1.msra.mxu0 0.0
    %346 = vmatprep.mubr.f32.mxu0 0.0
    %347 = vmatmul.mubr.f32.gmra.mrb[0].mxu0 %v267
    %v348 = vpop.f32.mrb[0].mxu0
    %v349 = vadd.f32 0.0, %v348
    %v350 = vpop.f32.mrb[0].mxu0
    %v351 = vadd.f32 0.0, %v350
    %352 = vdwg.mxu0
    %v354 = vsel %vm192, %v281, 0
    %356 = vmatprep.subr.mxu0 %v72
    %357 = vmatpush1.msra.mxu0 %v71
    %358 = vmatprep.subr.mxu0 %v74
    %359 = vmatpush1.msra.mxu0 %v73
    %360 = vmatprep.subr.mxu0 0.0
    %361 = vmatpush1.msra.mxu0 0.0
    %362 = vmatprep.subr.mxu0 0.0
    %363 = vmatpush1.msra.mxu0 0.0
    %364 = vmatprep.subr.mxu0 0.0
    %365 = vmatpush1.msra.mxu0 0.0
    %366 = vmatprep.subr.mxu0 0.0
    %367 = vmatpush1.msra.mxu0 0.0
    %368 = vmatprep.subr.mxu0 0.0
    %369 = vmatpush1.msra.mxu0 0.0
    %370 = vmatprep.subr.mxu0 0.0
    %371 = vmatpush1.msra.mxu0 0.0
    %372 = vmatprep.subr.mxu0 0.0
    %373 = vmatpush1.msra.mxu0 0.0
    %374 = vmatprep.subr.mxu0 0.0
    %375 = vmatpush1.msra.mxu0 0.0
    %376 = vmatprep.subr.mxu0 0.0
    %377 = vmatpush1.msra.mxu0 0.0
    %378 = vmatprep.subr.mxu0 0.0
    %379 = vmatpush1.msra.mxu0 0.0
    %380 = vmatprep.subr.mxu0 0.0
    %381 = vmatpush1.msra.mxu0 0.0
    %382 = vmatprep.subr.mxu0 0.0
    %383 = vmatpush1.msra.mxu0 0.0
    %384 = vmatprep.subr.mxu0 0.0
    %385 = vmatpush1.msra.mxu0 0.0
    %386 = vmatprep.subr.mxu0 0.0
    %387 = vmatpush1.msra.mxu0 0.0
    %388 = vmatprep.subr.mxu0 0.0
    %389 = vmatpush1.msra.mxu0 0.0
    %390 = vmatprep.subr.mxu0 0.0
    %391 = vmatpush1.msra.mxu0 0.0
    %392 = vmatprep.subr.mxu0 0.0
    %393 = vmatpush1.msra.mxu0 0.0
    %394 = vmatprep.subr.mxu0 0.0
    %395 = vmatpush1.msra.mxu0 0.0
    %396 = vmatprep.subr.mxu0 0.0
    %397 = vmatpush1.msra.mxu0 0.0
    %398 = vmatprep.subr.mxu0 0.0
    %399 = vmatpush1.msra.mxu0 0.0
    %400 = vmatprep.subr.mxu0 0.0
    %401 = vmatpush1.msra.mxu0 0.0
    %402 = vmatprep.subr.mxu0 0.0
    %403 = vmatpush1.msra.mxu0 0.0
    %404 = vmatprep.subr.mxu0 0.0
    %405 = vmatpush1.msra.mxu0 0.0
    %406 = vmatprep.subr.mxu0 0.0
    %407 = vmatpush1.msra.mxu0 0.0
    %408 = vmatprep.subr.mxu0 0.0
    %409 = vmatpush1.msra.mxu0 0.0
    %410 = vmatprep.subr.mxu0 0.0
    %411 = vmatpush1.msra.mxu0 0.0
    %412 = vmatprep.subr.mxu0 0.0
    %413 = vmatpush1.msra.mxu0 0.0
    %414 = vmatprep.subr.mxu0 0.0
    %415 = vmatpush1.msra.mxu0 0.0
    %416 = vmatprep.subr.mxu0 0.0
    %417 = vmatpush1.msra.mxu0 0.0
    %418 = vmatprep.subr.mxu0 0.0
    %419 = vmatpush1.msra.mxu0 0.0
    %420 = vmatprep.mubr.f32.mxu0 0.0
    %421 = vmatmul.mubr.f32.gmra.mrb[0].mxu0 %v354
    %v422 = vpop.f32.mrb[0].mxu0
    %v423 = vadd.f32 %v349, %v422
    %v424 = vpop.f32.mrb[0].mxu0
    %v425 = vadd.f32 %v351, %v424
    %426 = vdwg.mxu0
    %v427 = vadd.f32 %v423, %v112
    %v428 = vadd.f32 %v425, %v116
    %429 = vmax.xlane.f32.xlu0 %v428
    %v430 = vpop.xlane.xlu0 %429
    %v431 = vsub.f32 %v428, %v430
    %v432 = vmul.f32 %v431, 1.442695
    %v433 = vpow.pop %v432
    %434 = vadd.xlane.f32.xlu0 %v433
    %v435 = vpop.xlane.xlu0 %434
    %v436 = vlog2.pop %v435
    %v437 = vmul.f32 %v436, 0.6931472
    %v438 = vsub.f32 %v431, %v437
    %s439 = scalar_lea.vmem [#allocation9], 8
    %440 = vst [vmem:[%s439] sm:$0xff] %v438
    %s441 = scalar_lea.vmem [#allocation3], 16
    %v442 = vld [vmem:[%s441] sm:$0xff]
    %443 = vmatprep.subr.mxu0 %v76
    %444 = vmatpush1.msra.mxu0 %v75
    %445 = vmatprep.subr.mxu0 %v78
    %446 = vmatpush1.msra.mxu0 %v77
    %447 = vmatprep.subr.mxu0 %v80
    %448 = vmatpush1.msra.mxu0 %v79
    %449 = vmatprep.subr.mxu0 %v82
    %450 = vmatpush1.msra.mxu0 %v81
    %451 = vmatprep.subr.mxu0 %v84
    %452 = vmatpush1.msra.mxu0 %v83
    %453 = vmatprep.subr.mxu0 %v86
    %454 = vmatpush1.msra.mxu0 %v85
    %455 = vmatprep.subr.mxu0 %v88
    %456 = vmatpush1.msra.mxu0 %v87
    %457 = vmatprep.subr.mxu0 %v90
    %458 = vmatpush1.msra.mxu0 %v89
    %459 = vmatprep.subr.mxu0 %v92
    %460 = vmatpush1.msra.mxu0 %v91
    %461 = vmatprep.subr.mxu0 %v94
    %462 = vmatpush1.msra.mxu0 %v93
    %463 = vmatprep.subr.mxu0 %v96
    %464 = vmatpush1.msra.mxu0 %v95
    %465 = vmatprep.subr.mxu0 %v98
    %466 = vmatpush1.msra.mxu0 %v97
    %467 = vmatprep.subr.mxu0 %v100
    %468 = vmatpush1.msra.mxu0 %v99
    %469 = vmatprep.subr.mxu0 %v102
    %470 = vmatpush1.msra.mxu0 %v101
    %471 = vmatprep.subr.mxu0 %v104
    %472 = vmatpush1.msra.mxu0 %v103
    %473 = vmatprep.subr.mxu0 %v106
    %474 = vmatpush1.msra.mxu0 %v105
    %475 = vmatprep.subr.mxu0 0.0
    %476 = vmatpush1.msra.mxu0 0.0
    %477 = vmatprep.subr.mxu0 0.0
    %478 = vmatpush1.msra.mxu0 0.0
    %479 = vmatprep.subr.mxu0 0.0
    %480 = vmatpush1.msra.mxu0 0.0
    %481 = vmatprep.subr.mxu0 0.0
    %482 = vmatpush1.msra.mxu0 0.0
    %483 = vmatprep.subr.mxu0 0.0
    %484 = vmatpush1.msra.mxu0 0.0
    %485 = vmatprep.subr.mxu0 0.0
    %486 = vmatpush1.msra.mxu0 0.0
    %487 = vmatprep.subr.mxu0 0.0
    %488 = vmatpush1.msra.mxu0 0.0
    %489 = vmatprep.subr.mxu0 0.0
    %490 = vmatpush1.msra.mxu0 0.0
    %491 = vmatprep.subr.mxu0 0.0
    %492 = vmatpush1.msra.mxu0 0.0
    %493 = vmatprep.subr.mxu0 0.0
    %494 = vmatpush1.msra.mxu0 0.0
    %495 = vmatprep.subr.mxu0 0.0
    %496 = vmatpush1.msra.mxu0 0.0
    %497 = vmatprep.subr.mxu0 0.0
    %498 = vmatpush1.msra.mxu0 0.0
    %499 = vmatprep.subr.mxu0 0.0
    %500 = vmatpush1.msra.mxu0 0.0
    %501 = vmatprep.subr.mxu0 0.0
    %502 = vmatpush1.msra.mxu0 0.0
    %503 = vmatprep.subr.mxu0 0.0
    %504 = vmatpush1.msra.mxu0 0.0
    %505 = vmatprep.subr.mxu0 0.0
    %506 = vmatpush1.msra.mxu0 0.0
    %507 = vmatprep.mubr.f32.mxu0 0.0
    %508 = vmatmul.mubr.f32.gmra.mrb[0].mxu0 %v427
    %v509 = vpop.f32.mrb[0].mxu0
    %v510 = vadd.f32 0.0, %v509
    %v511 = vpop.f32.mrb[0].mxu0
    %v512 = vadd.f32 0.0, %v511
    %513 = vdwg.mxu0
    %v515 = vsel %vm192, %v442, 0
    %517 = vmatprep.subr.mxu0 %v72
    %518 = vmatpush1.msra.mxu0 %v71
    %519 = vmatprep.subr.mxu0 %v74
    %520 = vmatpush1.msra.mxu0 %v73
    %521 = vmatprep.subr.mxu0 0.0
    %522 = vmatpush1.msra.mxu0 0.0
    %523 = vmatprep.subr.mxu0 0.0
    %524 = vmatpush1.msra.mxu0 0.0
    %525 = vmatprep.subr.mxu0 0.0
    %526 = vmatpush1.msra.mxu0 0.0
    %527 = vmatprep.subr.mxu0 0.0
    %528 = vmatpush1.msra.mxu0 0.0
    %529 = vmatprep.subr.mxu0 0.0
    %530 = vmatpush1.msra.mxu0 0.0
    %531 = vmatprep.subr.mxu0 0.0
    %532 = vmatpush1.msra.mxu0 0.0
    %533 = vmatprep.subr.mxu0 0.0
    %534 = vmatpush1.msra.mxu0 0.0
    %535 = vmatprep.subr.mxu0 0.0
    %536 = vmatpush1.msra.mxu0 0.0
    %537 = vmatprep.subr.mxu0 0.0
    %538 = vmatpush1.msra.mxu0 0.0
    %539 = vmatprep.subr.mxu0 0.0
    %540 = vmatpush1.msra.mxu0 0.0
    %541 = vmatprep.subr.mxu0 0.0
    %542 = vmatpush1.msra.mxu0 0.0
    %543 = vmatprep.subr.mxu0 0.0
    %544 = vmatpush1.msra.mxu0 0.0
    %545 = vmatprep.subr.mxu0 0.0
    %546 = vmatpush1.msra.mxu0 0.0
    %547 = vmatprep.subr.mxu0 0.0
    %548 = vmatpush1.msra.mxu0 0.0
    %549 = vmatprep.subr.mxu0 0.0
    %550 = vmatpush1.msra.mxu0 0.0
    %551 = vmatprep.subr.mxu0 0.0
    %552 = vmatpush1.msra.mxu0 0.0
    %553 = vmatprep.subr.mxu0 0.0
    %554 = vmatpush1.msra.mxu0 0.0
    %555 = vmatprep.subr.mxu0 0.0
    %556 = vmatpush1.msra.mxu0 0.0
    %557 = vmatprep.subr.mxu0 0.0
    %558 = vmatpush1.msra.mxu0 0.0
    %559 = vmatprep.subr.mxu0 0.0
    %560 = vmatpush1.msra.mxu0 0.0
    %561 = vmatprep.subr.mxu0 0.0
    %562 = vmatpush1.msra.mxu0 0.0
    %563 = vmatprep.subr.mxu0 0.0
    %564 = vmatpush1.msra.mxu0 0.0
    %565 = vmatprep.subr.mxu0 0.0
    %566 = vmatpush1.msra.mxu0 0.0
    %567 = vmatprep.subr.mxu0 0.0
    %568 = vmatpush1.msra.mxu0 0.0
    %569 = vmatprep.subr.mxu0 0.0
    %570 = vmatpush1.msra.mxu0 0.0
    %571 = vmatprep.subr.mxu0 0.0
    %572 = vmatpush1.msra.mxu0 0.0
    %573 = vmatprep.subr.mxu0 0.0
    %574 = vmatpush1.msra.mxu0 0.0
    %575 = vmatprep.subr.mxu0 0.0
    %576 = vmatpush1.msra.mxu0 0.0
    %577 = vmatprep.subr.mxu0 0.0
    %578 = vmatpush1.msra.mxu0 0.0
    %579 = vmatprep.subr.mxu0 0.0
    %580 = vmatpush1.msra.mxu0 0.0
    %581 = vmatprep.mubr.f32.mxu0 0.0
    %582 = vmatmul.mubr.f32.gmra.mrb[0].mxu0 %v515
    %v583 = vpop.f32.mrb[0].mxu0
    %v584 = vadd.f32 %v510, %v583
    %v585 = vpop.f32.mrb[0].mxu0
    %v586 = vadd.f32 %v512, %v585
    %587 = vdwg.mxu0
    %v588 = vadd.f32 %v584, %v112
    %v589 = vadd.f32 %v586, %v116
    %590 = vmax.xlane.f32.xlu0 %v589
    %v591 = vpop.xlane.xlu0 %590
    %v592 = vsub.f32 %v589, %v591
    %v593 = vmul.f32 %v592, 1.442695
    %v594 = vpow.pop %v593
    %595 = vadd.xlane.f32.xlu0 %v594
    %v596 = vpop.xlane.xlu0 %595
    %v597 = vlog2.pop %v596
    %v598 = vmul.f32 %v597, 0.6931472
    %v599 = vsub.f32 %v592, %v598
    %s600 = scalar_lea.vmem [#allocation9], 16
    %601 = vst [vmem:[%s600] sm:$0xff] %v599
    %s602 = scalar_lea.vmem [#allocation3], 24
    %v603 = vld [vmem:[%s602] sm:$0xff]
    %604 = vmatprep.subr.mxu0 %v76
    %605 = vmatpush1.msra.mxu0 %v75
    %606 = vmatprep.subr.mxu0 %v78
    %607 = vmatpush1.msra.mxu0 %v77
    %608 = vmatprep.subr.mxu0 %v80
    %609 = vmatpush1.msra.mxu0 %v79
    %610 = vmatprep.subr.mxu0 %v82
    %611 = vmatpush1.msra.mxu0 %v81
    %612 = vmatprep.subr.mxu0 %v84
    %613 = vmatpush1.msra.mxu0 %v83
    %614 = vmatprep.subr.mxu0 %v86
    %615 = vmatpush1.msra.mxu0 %v85
    %616 = vmatprep.subr.mxu0 %v88
    %617 = vmatpush1.msra.mxu0 %v87
    %618 = vmatprep.subr.mxu0 %v90
    %619 = vmatpush1.msra.mxu0 %v89
    %620 = vmatprep.subr.mxu0 %v92
    %621 = vmatpush1.msra.mxu0 %v91
    %622 = vmatprep.subr.mxu0 %v94
    %623 = vmatpush1.msra.mxu0 %v93
    %624 = vmatprep.subr.mxu0 %v96
    %625 = vmatpush1.msra.mxu0 %v95
    %626 = vmatprep.subr.mxu0 %v98
    %627 = vmatpush1.msra.mxu0 %v97
    %628 = vmatprep.subr.mxu0 %v100
    %629 = vmatpush1.msra.mxu0 %v99
    %630 = vmatprep.subr.mxu0 %v102
    %631 = vmatpush1.msra.mxu0 %v101
    %632 = vmatprep.subr.mxu0 %v104
    %633 = vmatpush1.msra.mxu0 %v103
    %634 = vmatprep.subr.mxu0 %v106
    %635 = vmatpush1.msra.mxu0 %v105
    %636 = vmatprep.subr.mxu0 0.0
    %637 = vmatpush1.msra.mxu0 0.0
    %638 = vmatprep.subr.mxu0 0.0
    %639 = vmatpush1.msra.mxu0 0.0
    %640 = vmatprep.subr.mxu0 0.0
    %641 = vmatpush1.msra.mxu0 0.0
    %642 = vmatprep.subr.mxu0 0.0
    %643 = vmatpush1.msra.mxu0 0.0
    %644 = vmatprep.subr.mxu0 0.0
    %645 = vmatpush1.msra.mxu0 0.0
    %646 = vmatprep.subr.mxu0 0.0
    %647 = vmatpush1.msra.mxu0 0.0
    %648 = vmatprep.subr.mxu0 0.0
    %649 = vmatpush1.msra.mxu0 0.0
    %650 = vmatprep.subr.mxu0 0.0
    %651 = vmatpush1.msra.mxu0 0.0
    %652 = vmatprep.subr.mxu0 0.0
    %653 = vmatpush1.msra.mxu0 0.0
    %654 = vmatprep.subr.mxu0 0.0
    %655 = vmatpush1.msra.mxu0 0.0
    %656 = vmatprep.subr.mxu0 0.0
    %657 = vmatpush1.msra.mxu0 0.0
    %658 = vmatprep.subr.mxu0 0.0
    %659 = vmatpush1.msra.mxu0 0.0
    %660 = vmatprep.subr.mxu0 0.0
    %661 = vmatpush1.msra.mxu0 0.0
    %662 = vmatprep.subr.mxu0 0.0
    %663 = vmatpush1.msra.mxu0 0.0
    %664 = vmatprep.subr.mxu0 0.0
    %665 = vmatpush1.msra.mxu0 0.0
    %666 = vmatprep.subr.mxu0 0.0
    %667 = vmatpush1.msra.mxu0 0.0
    %668 = vmatprep.mubr.f32.mxu0 0.0
    %669 = vmatmul.mubr.f32.gmra.mrb[0].mxu0 %v588
    %v670 = vpop.f32.mrb[0].mxu0
    %v671 = vadd.f32 0.0, %v670
    %v672 = vpop.f32.mrb[0].mxu0
    %v673 = vadd.f32 0.0, %v672
    %674 = vdwg.mxu0
    %v676 = vsel %vm192, %v603, 0
    %678 = vmatprep.subr.mxu0 %v72
    %679 = vmatpush1.msra.mxu0 %v71
    %680 = vmatprep.subr.mxu0 %v74
    %681 = vmatpush1.msra.mxu0 %v73
    %682 = vmatprep.subr.mxu0 0.0
    %683 = vmatpush1.msra.mxu0 0.0
    %684 = vmatprep.subr.mxu0 0.0
    %685 = vmatpush1.msra.mxu0 0.0
    %686 = vmatprep.subr.mxu0 0.0
    %687 = vmatpush1.msra.mxu0 0.0
    %688 = vmatprep.subr.mxu0 0.0
    %689 = vmatpush1.msra.mxu0 0.0
    %690 = vmatprep.subr.mxu0 0.0
    %691 = vmatpush1.msra.mxu0 0.0
    %692 = vmatprep.subr.mxu0 0.0
    %693 = vmatpush1.msra.mxu0 0.0
    %694 = vmatprep.subr.mxu0 0.0
    %695 = vmatpush1.msra.mxu0 0.0
    %696 = vmatprep.subr.mxu0 0.0
    %697 = vmatpush1.msra.mxu0 0.0
    %698 = vmatprep.subr.mxu0 0.0
    %699 = vmatpush1.msra.mxu0 0.0
    %700 = vmatprep.subr.mxu0 0.0
    %701 = vmatpush1.msra.mxu0 0.0
    %702 = vmatprep.subr.mxu0 0.0
    %703 = vmatpush1.msra.mxu0 0.0
    %704 = vmatprep.subr.mxu0 0.0
    %705 = vmatpush1.msra.mxu0 0.0
    %706 = vmatprep.subr.mxu0 0.0
    %707 = vmatpush1.msra.mxu0 0.0
    %708 = vmatprep.subr.mxu0 0.0
    %709 = vmatpush1.msra.mxu0 0.0
    %710 = vmatprep.subr.mxu0 0.0
    %711 = vmatpush1.msra.mxu0 0.0
    %712 = vmatprep.subr.mxu0 0.0
    %713 = vmatpush1.msra.mxu0 0.0
    %714 = vmatprep.subr.mxu0 0.0
    %715 = vmatpush1.msra.mxu0 0.0
    %716 = vmatprep.subr.mxu0 0.0
    %717 = vmatpush1.msra.mxu0 0.0
    %718 = vmatprep.subr.mxu0 0.0
    %719 = vmatpush1.msra.mxu0 0.0
    %720 = vmatprep.subr.mxu0 0.0
    %721 = vmatpush1.msra.mxu0 0.0
    %722 = vmatprep.subr.mxu0 0.0
    %723 = vmatpush1.msra.mxu0 0.0
    %724 = vmatprep.subr.mxu0 0.0
    %725 = vmatpush1.msra.mxu0 0.0
    %726 = vmatprep.subr.mxu0 0.0
    %727 = vmatpush1.msra.mxu0 0.0
    %728 = vmatprep.subr.mxu0 0.0
    %729 = vmatpush1.msra.mxu0 0.0
    %730 = vmatprep.subr.mxu0 0.0
    %731 = vmatpush1.msra.mxu0 0.0
    %732 = vmatprep.subr.mxu0 0.0
    %733 = vmatpush1.msra.mxu0 0.0
    %734 = vmatprep.subr.mxu0 0.0
    %735 = vmatpush1.msra.mxu0 0.0
    %736 = vmatprep.subr.mxu0 0.0
    %737 = vmatpush1.msra.mxu0 0.0
    %738 = vmatprep.subr.mxu0 0.0
    %739 = vmatpush1.msra.mxu0 0.0
    %740 = vmatprep.subr.mxu0 0.0
    %741 = vmatpush1.msra.mxu0 0.0
    %742 = vmatprep.mubr.f32.mxu0 0.0
    %743 = vmatmul.mubr.f32.gmra.mrb[0].mxu0 %v676
    %v744 = vpop.f32.mrb[0].mxu0
    %v745 = vadd.f32 %v671, %v744
    %v746 = vpop.f32.mrb[0].mxu0
    %v747 = vadd.f32 %v673, %v746
    %748 = vdwg.mxu0
    %v749 = vadd.f32 %v745, %v112
    %v750 = vadd.f32 %v747, %v116
    %751 = vmax.xlane.f32.xlu0 %v750
    %v752 = vpop.xlane.xlu0 %751
    %v753 = vsub.f32 %v750, %v752
    %v754 = vmul.f32 %v753, 1.442695
    %v755 = vpow.pop %v754
    %756 = vadd.xlane.f32.xlu0 %v755
    %v757 = vpop.xlane.xlu0 %756
    %v758 = vlog2.pop %v757
    %v759 = vmul.f32 %v758, 0.6931472
    %v760 = vsub.f32 %v753, %v759
    %s761 = scalar_lea.vmem [#allocation9], 24
    %762 = vst [vmem:[%s761] sm:$0xff] %v760
    %s763 = scalar_lea.vmem [#allocation3], 32
    %v764 = vld [vmem:[%s763] sm:$0xff]
    %765 = vmatprep.subr.mxu0 %v76
    %766 = vmatpush1.msra.mxu0 %v75
    %767 = vmatprep.subr.mxu0 %v78
    %768 = vmatpush1.msra.mxu0 %v77
    %769 = vmatprep.subr.mxu0 %v80
    %770 = vmatpush1.msra.mxu0 %v79
    %771 = vmatprep.subr.mxu0 %v82
    %772 = vmatpush1.msra.mxu0 %v81
    %773 = vmatprep.subr.mxu0 %v84
    %774 = vmatpush1.msra.mxu0 %v83
    %775 = vmatprep.subr.mxu0 %v86
    %776 = vmatpush1.msra.mxu0 %v85
    %777 = vmatprep.subr.mxu0 %v88
    %778 = vmatpush1.msra.mxu0 %v87
    %779 = vmatprep.subr.mxu0 %v90
    %780 = vmatpush1.msra.mxu0 %v89
    %781 = vmatprep.subr.mxu0 %v92
    %782 = vmatpush1.msra.mxu0 %v91
    %783 = vmatprep.subr.mxu0 %v94
    %784 = vmatpush1.msra.mxu0 %v93
    %785 = vmatprep.subr.mxu0 %v96
    %786 = vmatpush1.msra.mxu0 %v95
    %787 = vmatprep.subr.mxu0 %v98
    %788 = vmatpush1.msra.mxu0 %v97
    %789 = vmatprep.subr.mxu0 %v100
    %790 = vmatpush1.msra.mxu0 %v99
    %791 = vmatprep.subr.mxu0 %v102
    %792 = vmatpush1.msra.mxu0 %v101
    %793 = vmatprep.subr.mxu0 %v104
    %794 = vmatpush1.msra.mxu0 %v103
    %795 = vmatprep.subr.mxu0 %v106
    %796 = vmatpush1.msra.mxu0 %v105
    %797 = vmatprep.subr.mxu0 0.0
    %798 = vmatpush1.msra.mxu0 0.0
    %799 = vmatprep.subr.mxu0 0.0
    %800 = vmatpush1.msra.mxu0 0.0
    %801 = vmatprep.subr.mxu0 0.0
    %802 = vmatpush1.msra.mxu0 0.0
    %803 = vmatprep.subr.mxu0 0.0
    %804 = vmatpush1.msra.mxu0 0.0
    %805 = vmatprep.subr.mxu0 0.0
    %806 = vmatpush1.msra.mxu0 0.0
    %807 = vmatprep.subr.mxu0 0.0
    %808 = vmatpush1.msra.mxu0 0.0
    %809 = vmatprep.subr.mxu0 0.0
    %810 = vmatpush1.msra.mxu0 0.0
    %811 = vmatprep.subr.mxu0 0.0
    %812 = vmatpush1.msra.mxu0 0.0
    %813 = vmatprep.subr.mxu0 0.0
    %814 = vmatpush1.msra.mxu0 0.0
    %815 = vmatprep.subr.mxu0 0.0
    %816 = vmatpush1.msra.mxu0 0.0
    %817 = vmatprep.subr.mxu0 0.0
    %818 = vmatpush1.msra.mxu0 0.0
    %819 = vmatprep.subr.mxu0 0.0
    %820 = vmatpush1.msra.mxu0 0.0
    %821 = vmatprep.subr.mxu0 0.0
    %822 = vmatpush1.msra.mxu0 0.0
    %823 = vmatprep.subr.mxu0 0.0
    %824 = vmatpush1.msra.mxu0 0.0
    %825 = vmatprep.subr.mxu0 0.0
    %826 = vmatpush1.msra.mxu0 0.0
    %827 = vmatprep.subr.mxu0 0.0
    %828 = vmatpush1.msra.mxu0 0.0
    %829 = vmatprep.mubr.f32.mxu0 0.0
    %830 = vmatmul.mubr.f32.gmra.mrb[0].mxu0 %v749
    %v831 = vpop.f32.mrb[0].mxu0
    %v832 = vadd.f32 0.0, %v831
    %v833 = vpop.f32.mrb[0].mxu0
    %v834 = vadd.f32 0.0, %v833
    %835 = vdwg.mxu0
    %v837 = vsel %vm192, %v764, 0
    %839 = vmatprep.subr.mxu0 %v72
    %840 = vmatpush1.msra.mxu0 %v71
    %841 = vmatprep.subr.mxu0 %v74
    %842 = vmatpush1.msra.mxu0 %v73
    %843 = vmatprep.subr.mxu0 0.0
    %844 = vmatpush1.msra.mxu0 0.0
    %845 = vmatprep.subr.mxu0 0.0
    %846 = vmatpush1.msra.mxu0 0.0
    %847 = vmatprep.subr.mxu0 0.0
    %848 = vmatpush1.msra.mxu0 0.0
    %849 = vmatprep.subr.mxu0 0.0
    %850 = vmatpush1.msra.mxu0 0.0
    %851 = vmatprep.subr.mxu0 0.0
    %852 = vmatpush1.msra.mxu0 0.0
    %853 = vmatprep.subr.mxu0 0.0
    %854 = vmatpush1.msra.mxu0 0.0
    %855 = vmatprep.subr.mxu0 0.0
    %856 = vmatpush1.msra.mxu0 0.0
    %857 = vmatprep.subr.mxu0 0.0
    %858 = vmatpush1.msra.mxu0 0.0
    %859 = vmatprep.subr.mxu0 0.0
    %860 = vmatpush1.msra.mxu0 0.0
    %861 = vmatprep.subr.mxu0 0.0
    %862 = vmatpush1.msra.mxu0 0.0
    %863 = vmatprep.subr.mxu0 0.0
    %864 = vmatpush1.msra.mxu0 0.0
    %865 = vmatprep.subr.mxu0 0.0
    %866 = vmatpush1.msra.mxu0 0.0
    %867 = vmatprep.subr.mxu0 0.0
    %868 = vmatpush1.msra.mxu0 0.0
    %869 = vmatprep.subr.mxu0 0.0
    %870 = vmatpush1.msra.mxu0 0.0
    %871 = vmatprep.subr.mxu0 0.0
    %872 = vmatpush1.msra.mxu0 0.0
    %873 = vmatprep.subr.mxu0 0.0
    %874 = vmatpush1.msra.mxu0 0.0
    %875 = vmatprep.subr.mxu0 0.0
    %876 = vmatpush1.msra.mxu0 0.0
    %877 = vmatprep.subr.mxu0 0.0
    %878 = vmatpush1.msra.mxu0 0.0
    %879 = vmatprep.subr.mxu0 0.0
    %880 = vmatpush1.msra.mxu0 0.0
    %881 = vmatprep.subr.mxu0 0.0
    %882 = vmatpush1.msra.mxu0 0.0
    %883 = vmatprep.subr.mxu0 0.0
    %884 = vmatpush1.msra.mxu0 0.0
    %885 = vmatprep.subr.mxu0 0.0
    %886 = vmatpush1.msra.mxu0 0.0
    %887 = vmatprep.subr.mxu0 0.0
    %888 = vmatpush1.msra.mxu0 0.0
    %889 = vmatprep.subr.mxu0 0.0
    %890 = vmatpush1.msra.mxu0 0.0
    %891 = vmatprep.subr.mxu0 0.0
    %892 = vmatpush1.msra.mxu0 0.0
    %893 = vmatprep.subr.mxu0 0.0
    %894 = vmatpush1.msra.mxu0 0.0
    %895 = vmatprep.subr.mxu0 0.0
    %896 = vmatpush1.msra.mxu0 0.0
    %897 = vmatprep.subr.mxu0 0.0
    %898 = vmatpush1.msra.mxu0 0.0
    %899 = vmatprep.subr.mxu0 0.0
    %900 = vmatpush1.msra.mxu0 0.0
    %901 = vmatprep.subr.mxu0 0.0
    %902 = vmatpush1.msra.mxu0 0.0
    %903 = vmatprep.mubr.f32.mxu0 0.0
    %904 = vmatmul.mubr.f32.gmra.mrb[0].mxu0 %v837
    %v905 = vpop.f32.mrb[0].mxu0
    %v906 = vadd.f32 %v832, %v905
    %v907 = vpop.f32.mrb[0].mxu0
    %v908 = vadd.f32 %v834, %v907
    %909 = vdwg.mxu0
    %v910 = vadd.f32 %v906, %v112
    %v911 = vadd.f32 %v908, %v116
    %912 = vmax.xlane.f32.xlu0 %v911
    %v913 = vpop.xlane.xlu0 %912
    %v914 = vsub.f32 %v911, %v913
    %v915 = vmul.f32 %v914, 1.442695
    %v916 = vpow.pop %v915
    %917 = vadd.xlane.f32.xlu0 %v916
    %v918 = vpop.xlane.xlu0 %917
    %v919 = vlog2.pop %v918
    %v920 = vmul.f32 %v919, 0.6931472
    %v921 = vsub.f32 %v914, %v920
    %s922 = scalar_lea.vmem [#allocation9], 32
    %923 = vst [vmem:[%s922] sm:$0xff] %v921
    %s924 = scalar_lea.vmem [#allocation3], 40
    %v925 = vld [vmem:[%s924] sm:$0xff]
    %926 = vmatprep.subr.mxu0 %v76
    %927 = vmatpush1.msra.mxu0 %v75
    %928 = vmatprep.subr.mxu0 %v78
    %929 = vmatpush1.msra.mxu0 %v77
    %930 = vmatprep.subr.mxu0 %v80
    %931 = vmatpush1.msra.mxu0 %v79
    %932 = vmatprep.subr.mxu0 %v82
    %933 = vmatpush1.msra.mxu0 %v81
    %934 = vmatprep.subr.mxu0 %v84
    %935 = vmatpush1.msra.mxu0 %v83
    %936 = vmatprep.subr.mxu0 %v86
    %937 = vmatpush1.msra.mxu0 %v85
    %938 = vmatprep.subr.mxu0 %v88
    %939 = vmatpush1.msra.mxu0 %v87
    %940 = vmatprep.subr.mxu0 %v90
    %941 = vmatpush1.msra.mxu0 %v89
    %942 = vmatprep.subr.mxu0 %v92
    %943 = vmatpush1.msra.mxu0 %v91
    %944 = vmatprep.subr.mxu0 %v94
    %945 = vmatpush1.msra.mxu0 %v93
    %946 = vmatprep.subr.mxu0 %v96
    %947 = vmatpush1.msra.mxu0 %v95
    %948 = vmatprep.subr.mxu0 %v98
    %949 = vmatpush1.msra.mxu0 %v97
    %950 = vmatprep.subr.mxu0 %v100
    %951 = vmatpush1.msra.mxu0 %v99
    %952 = vmatprep.subr.mxu0 %v102
    %953 = vmatpush1.msra.mxu0 %v101
    %954 = vmatprep.subr.mxu0 %v104
    %955 = vmatpush1.msra.mxu0 %v103
    %956 = vmatprep.subr.mxu0 %v106
    %957 = vmatpush1.msra.mxu0 %v105
    %958 = vmatprep.subr.mxu0 0.0
    %959 = vmatpush1.msra.mxu0 0.0
    %960 = vmatprep.subr.mxu0 0.0
    %961 = vmatpush1.msra.mxu0 0.0
    %962 = vmatprep.subr.mxu0 0.0
    %963 = vmatpush1.msra.mxu0 0.0
    %964 = vmatprep.subr.mxu0 0.0
    %965 = vmatpush1.msra.mxu0 0.0
    %966 = vmatprep.subr.mxu0 0.0
    %967 = vmatpush1.msra.mxu0 0.0
    %968 = vmatprep.subr.mxu0 0.0
    %969 = vmatpush1.msra.mxu0 0.0
    %970 = vmatprep.subr.mxu0 0.0
    %971 = vmatpush1.msra.mxu0 0.0
    %972 = vmatprep.subr.mxu0 0.0
    %973 = vmatpush1.msra.mxu0 0.0
    %974 = vmatprep.subr.mxu0 0.0
    %975 = vmatpush1.msra.mxu0 0.0
    %976 = vmatprep.subr.mxu0 0.0
    %977 = vmatpush1.msra.mxu0 0.0
    %978 = vmatprep.subr.mxu0 0.0
    %979 = vmatpush1.msra.mxu0 0.0
    %980 = vmatprep.subr.mxu0 0.0
    %981 = vmatpush1.msra.mxu0 0.0
    %982 = vmatprep.subr.mxu0 0.0
    %983 = vmatpush1.msra.mxu0 0.0
    %984 = vmatprep.subr.mxu0 0.0
    %985 = vmatpush1.msra.mxu0 0.0
    %986 = vmatprep.subr.mxu0 0.0
    %987 = vmatpush1.msra.mxu0 0.0
    %988 = vmatprep.subr.mxu0 0.0
    %989 = vmatpush1.msra.mxu0 0.0
    %990 = vmatprep.mubr.f32.mxu0 0.0
    %991 = vmatmul.mubr.f32.gmra.mrb[0].mxu0 %v910
    %v992 = vpop.f32.mrb[0].mxu0
    %v993 = vadd.f32 0.0, %v992
    %v994 = vpop.f32.mrb[0].mxu0
    %v995 = vadd.f32 0.0, %v994
    %996 = vdwg.mxu0
    %v998 = vsel %vm192, %v925, 0
    %1000 = vmatprep.subr.mxu0 %v72
    %1001 = vmatpush1.msra.mxu0 %v71
    %1002 = vmatprep.subr.mxu0 %v74
    %1003 = vmatpush1.msra.mxu0 %v73
    %1004 = vmatprep.subr.mxu0 0.0
    %1005 = vmatpush1.msra.mxu0 0.0
    %1006 = vmatprep.subr.mxu0 0.0
    %1007 = vmatpush1.msra.mxu0 0.0
    %1008 = vmatprep.subr.mxu0 0.0
    %1009 = vmatpush1.msra.mxu0 0.0
    %1010 = vmatprep.subr.mxu0 0.0
    %1011 = vmatpush1.msra.mxu0 0.0
    %1012 = vmatprep.subr.mxu0 0.0
    %1013 = vmatpush1.msra.mxu0 0.0
    %1014 = vmatprep.subr.mxu0 0.0
    %1015 = vmatpush1.msra.mxu0 0.0
    %1016 = vmatprep.subr.mxu0 0.0
    %1017 = vmatpush1.msra.mxu0 0.0
    %1018 = vmatprep.subr.mxu0 0.0
    %1019 = vmatpush1.msra.mxu0 0.0
    %1020 = vmatprep.subr.mxu0 0.0
    %1021 = vmatpush1.msra.mxu0 0.0
    %1022 = vmatprep.subr.mxu0 0.0
    %1023 = vmatpush1.msra.mxu0 0.0
    %1024 = vmatprep.subr.mxu0 0.0
    %1025 = vmatpush1.msra.mxu0 0.0
    %1026 = vmatprep.subr.mxu0 0.0
    %1027 = vmatpush1.msra.mxu0 0.0
    %1028 = vmatprep.subr.mxu0 0.0
    %1029 = vmatpush1.msra.mxu0 0.0
    %1030 = vmatprep.subr.mxu0 0.0
    %1031 = vmatpush1.msra.mxu0 0.0
    %1032 = vmatprep.subr.mxu0 0.0
    %1033 = vmatpush1.msra.mxu0 0.0
    %1034 = vmatprep.subr.mxu0 0.0
    %1035 = vmatpush1.msra.mxu0 0.0
    %1036 = vmatprep.subr.mxu0 0.0
    %1037 = vmatpush1.msra.mxu0 0.0
    %1038 = vmatprep.subr.mxu0 0.0
    %1039 = vmatpush1.msra.mxu0 0.0
    %1040 = vmatprep.subr.mxu0 0.0
    %1041 = vmatpush1.msra.mxu0 0.0
    %1042 = vmatprep.subr.mxu0 0.0
    %1043 = vmatpush1.msra.mxu0 0.0
    %1044 = vmatprep.subr.mxu0 0.0
    %1045 = vmatpush1.msra.mxu0 0.0
    %1046 = vmatprep.subr.mxu0 0.0
    %1047 = vmatpush1.msra.mxu0 0.0
    %1048 = vmatprep.subr.mxu0 0.0
    %1049 = vmatpush1.msra.mxu0 0.0
    %1050 = vmatprep.subr.mxu0 0.0
    %1051 = vmatpush1.msra.mxu0 0.0
    %1052 = vmatprep.subr.mxu0 0.0
    %1053 = vmatpush1.msra.mxu0 0.0
    %1054 = vmatprep.subr.mxu0 0.0
    %1055 = vmatpush1.msra.mxu0 0.0
    %1056 = vmatprep.subr.mxu0 0.0
    %1057 = vmatpush1.msra.mxu0 0.0
    %1058 = vmatprep.subr.mxu0 0.0
    %1059 = vmatpush1.msra.mxu0 0.0
    %1060 = vmatprep.subr.mxu0 0.0
    %1061 = vmatpush1.msra.mxu0 0.0
    %1062 = vmatprep.subr.mxu0 0.0
    %1063 = vmatpush1.msra.mxu0 0.0
    %1064 = vmatprep.mubr.f32.mxu0 0.0
    %1065 = vmatmul.mubr.f32.gmra.mrb[0].mxu0 %v998
    %v1066 = vpop.f32.mrb[0].mxu0
    %v1067 = vadd.f32 %v993, %v1066
    %v1068 = vpop.f32.mrb[0].mxu0
    %v1069 = vadd.f32 %v995, %v1068
    %1070 = vdwg.mxu0
    %v1071 = vadd.f32 %v1067, %v112
    %v1072 = vadd.f32 %v1069, %v116
    %1073 = vmax.xlane.f32.xlu0 %v1072
    %v1074 = vpop.xlane.xlu0 %1073
    %v1075 = vsub.f32 %v1072, %v1074
    %v1076 = vmul.f32 %v1075, 1.442695
    %v1077 = vpow.pop %v1076
    %1078 = vadd.xlane.f32.xlu0 %v1077
    %v1079 = vpop.xlane.xlu0 %1078
    %v1080 = vlog2.pop %v1079
    %v1081 = vmul.f32 %v1080, 0.6931472
    %v1082 = vsub.f32 %v1075, %v1081
    %s1083 = scalar_lea.vmem [#allocation9], 40
    %1084 = vst [vmem:[%s1083] sm:$0xff] %v1082
    %s1085 = scalar_lea.vmem [#allocation3], 48
    %v1086 = vld [vmem:[%s1085] sm:$0xff]
    %1087 = vmatprep.subr.mxu0 %v76
    %1088 = vmatpush1.msra.mxu0 %v75
    %1089 = vmatprep.subr.mxu0 %v78
    %1090 = vmatpush1.msra.mxu0 %v77
    %1091 = vmatprep.subr.mxu0 %v80
    %1092 = vmatpush1.msra.mxu0 %v79
    %1093 = vmatprep.subr.mxu0 %v82
    %1094 = vmatpush1.msra.mxu0 %v81
    %1095 = vmatprep.subr.mxu0 %v84
    %1096 = vmatpush1.msra.mxu0 %v83
    %1097 = vmatprep.subr.mxu0 %v86
    %1098 = vmatpush1.msra.mxu0 %v85
    %1099 = vmatprep.subr.mxu0 %v88
    %1100 = vmatpush1.msra.mxu0 %v87
    %1101 = vmatprep.subr.mxu0 %v90
    %1102 = vmatpush1.msra.mxu0 %v89
    %1103 = vmatprep.subr.mxu0 %v92
    %1104 = vmatpush1.msra.mxu0 %v91
    %1105 = vmatprep.subr.mxu0 %v94
    %1106 = vmatpush1.msra.mxu0 %v93
    %1107 = vmatprep.subr.mxu0 %v96
    %1108 = vmatpush1.msra.mxu0 %v95
    %1109 = vmatprep.subr.mxu0 %v98
    %1110 = vmatpush1.msra.mxu0 %v97
    %1111 = vmatprep.subr.mxu0 %v100
    %1112 = vmatpush1.msra.mxu0 %v99
    %1113 = vmatprep.subr.mxu0 %v102
    %1114 = vmatpush1.msra.mxu0 %v101
    %1115 = vmatprep.subr.mxu0 %v104
    %1116 = vmatpush1.msra.mxu0 %v103
    %1117 = vmatprep.subr.mxu0 %v106
    %1118 = vmatpush1.msra.mxu0 %v105
    %1119 = vmatprep.subr.mxu0 0.0
    %1120 = vmatpush1.msra.mxu0 0.0
    %1121 = vmatprep.subr.mxu0 0.0
    %1122 = vmatpush1.msra.mxu0 0.0
    %1123 = vmatprep.subr.mxu0 0.0
    %1124 = vmatpush1.msra.mxu0 0.0
    %1125 = vmatprep.subr.mxu0 0.0
    %1126 = vmatpush1.msra.mxu0 0.0
    %1127 = vmatprep.subr.mxu0 0.0
    %1128 = vmatpush1.msra.mxu0 0.0
    %1129 = vmatprep.subr.mxu0 0.0
    %1130 = vmatpush1.msra.mxu0 0.0
    %1131 = vmatprep.subr.mxu0 0.0
    %1132 = vmatpush1.msra.mxu0 0.0
    %1133 = vmatprep.subr.mxu0 0.0
    %1134 = vmatpush1.msra.mxu0 0.0
    %1135 = vmatprep.subr.mxu0 0.0
    %1136 = vmatpush1.msra.mxu0 0.0
    %1137 = vmatprep.subr.mxu0 0.0
    %1138 = vmatpush1.msra.mxu0 0.0
    %1139 = vmatprep.subr.mxu0 0.0
    %1140 = vmatpush1.msra.mxu0 0.0
    %1141 = vmatprep.subr.mxu0 0.0
    %1142 = vmatpush1.msra.mxu0 0.0
    %1143 = vmatprep.subr.mxu0 0.0
    %1144 = vmatpush1.msra.mxu0 0.0
    %1145 = vmatprep.subr.mxu0 0.0
    %1146 = vmatpush1.msra.mxu0 0.0
    %1147 = vmatprep.subr.mxu0 0.0
    %1148 = vmatpush1.msra.mxu0 0.0
    %1149 = vmatprep.subr.mxu0 0.0
    %1150 = vmatpush1.msra.mxu0 0.0
    %1151 = vmatprep.mubr.f32.mxu0 0.0
    %1152 = vmatmul.mubr.f32.gmra.mrb[0].mxu0 %v1071
    %v1153 = vpop.f32.mrb[0].mxu0
    %v1154 = vadd.f32 0.0, %v1153
    %v1155 = vpop.f32.mrb[0].mxu0
    %v1156 = vadd.f32 0.0, %v1155
    %1157 = vdwg.mxu0
    %v1159 = vsel %vm192, %v1086, 0
    %1161 = vmatprep.subr.mxu0 %v72
    %1162 = vmatpush1.msra.mxu0 %v71
    %1163 = vmatprep.subr.mxu0 %v74
    %1164 = vmatpush1.msra.mxu0 %v73
    %1165 = vmatprep.subr.mxu0 0.0
    %1166 = vmatpush1.msra.mxu0 0.0
    %1167 = vmatprep.subr.mxu0 0.0
    %1168 = vmatpush1.msra.mxu0 0.0
    %1169 = vmatprep.subr.mxu0 0.0
    %1170 = vmatpush1.msra.mxu0 0.0
    %1171 = vmatprep.subr.mxu0 0.0
    %1172 = vmatpush1.msra.mxu0 0.0
    %1173 = vmatprep.subr.mxu0 0.0
    %1174 = vmatpush1.msra.mxu0 0.0
    %1175 = vmatprep.subr.mxu0 0.0
    %1176 = vmatpush1.msra.mxu0 0.0
    %1177 = vmatprep.subr.mxu0 0.0
    %1178 = vmatpush1.msra.mxu0 0.0
    %1179 = vmatprep.subr.mxu0 0.0
    %1180 = vmatpush1.msra.mxu0 0.0
    %1181 = vmatprep.subr.mxu0 0.0
    %1182 = vmatpush1.msra.mxu0 0.0
    %1183 = vmatprep.subr.mxu0 0.0
    %1184 = vmatpush1.msra.mxu0 0.0
    %1185 = vmatprep.subr.mxu0 0.0
    %1186 = vmatpush1.msra.mxu0 0.0
    %1187 = vmatprep.subr.mxu0 0.0
    %1188 = vmatpush1.msra.mxu0 0.0
    %1189 = vmatprep.subr.mxu0 0.0
    %1190 = vmatpush1.msra.mxu0 0.0
    %1191 = vmatprep.subr.mxu0 0.0
    %1192 = vmatpush1.msra.mxu0 0.0
    %1193 = vmatprep.subr.mxu0 0.0
    %1194 = vmatpush1.msra.mxu0 0.0
    %1195 = vmatprep.subr.mxu0 0.0
    %1196 = vmatpush1.msra.mxu0 0.0
    %1197 = vmatprep.subr.mxu0 0.0
    %1198 = vmatpush1.msra.mxu0 0.0
    %1199 = vmatprep.subr.mxu0 0.0
    %1200 = vmatpush1.msra.mxu0 0.0
    %1201 = vmatprep.subr.mxu0 0.0
    %1202 = vmatpush1.msra.mxu0 0.0
    %1203 = vmatprep.subr.mxu0 0.0
    %1204 = vmatpush1.msra.mxu0 0.0
    %1205 = vmatprep.subr.mxu0 0.0
    %1206 = vmatpush1.msra.mxu0 0.0
    %1207 = vmatprep.subr.mxu0 0.0
    %1208 = vmatpush1.msra.mxu0 0.0
    %1209 = vmatprep.subr.mxu0 0.0
    %1210 = vmatpush1.msra.mxu0 0.0
    %1211 = vmatprep.subr.mxu0 0.0
    %1212 = vmatpush1.msra.mxu0 0.0
    %1213 = vmatprep.subr.mxu0 0.0
    %1214 = vmatpush1.msra.mxu0 0.0
    %1215 = vmatprep.subr.mxu0 0.0
    %1216 = vmatpush1.msra.mxu0 0.0
    %1217 = vmatprep.subr.mxu0 0.0
    %1218 = vmatpush1.msra.mxu0 0.0
    %1219 = vmatprep.subr.mxu0 0.0
    %1220 = vmatpush1.msra.mxu0 0.0
    %1221 = vmatprep.subr.mxu0 0.0
    %1222 = vmatpush1.msra.mxu0 0.0
    %1223 = vmatprep.subr.mxu0 0.0
    %1224 = vmatpush1.msra.mxu0 0.0
    %1225 = vmatprep.mubr.f32.mxu0 0.0
    %1226 = vmatmul.mubr.f32.gmra.mrb[0].mxu0 %v1159
    %v1227 = vpop.f32.mrb[0].mxu0
    %v1228 = vadd.f32 %v1154, %v1227
    %v1229 = vpop.f32.mrb[0].mxu0
    %v1230 = vadd.f32 %v1156, %v1229
    %1231 = vdwg.mxu0
    %v1232 = vadd.f32 %v1228, %v112
    %v1233 = vadd.f32 %v1230, %v116
    %1234 = vmax.xlane.f32.xlu0 %v1233
    %v1235 = vpop.xlane.xlu0 %1234
    %v1236 = vsub.f32 %v1233, %v1235
    %v1237 = vmul.f32 %v1236, 1.442695
    %v1238 = vpow.pop %v1237
    %1239 = vadd.xlane.f32.xlu0 %v1238
    %v1240 = vpop.xlane.xlu0 %1239
    %v1241 = vlog2.pop %v1240
    %v1242 = vmul.f32 %v1241, 0.6931472
    %v1243 = vsub.f32 %v1236, %v1242
    %s1244 = scalar_lea.vmem [#allocation9], 48
    %1245 = vst [vmem:[%s1244] sm:$0xff] %v1243
    %s1246 = scalar_lea.vmem [#allocation3], 56
    %v1247 = vld [vmem:[%s1246] sm:$0xff]
    %1248 = vmatprep.subr.mxu0 %v76
    %1249 = vmatpush1.msra.mxu0 %v75
    %1250 = vmatprep.subr.mxu0 %v78
    %1251 = vmatpush1.msra.mxu0 %v77
    %1252 = vmatprep.subr.mxu0 %v80
    %1253 = vmatpush1.msra.mxu0 %v79
    %1254 = vmatprep.subr.mxu0 %v82
    %1255 = vmatpush1.msra.mxu0 %v81
    %1256 = vmatprep.subr.mxu0 %v84
    %1257 = vmatpush1.msra.mxu0 %v83
    %1258 = vmatprep.subr.mxu0 %v86
    %1259 = vmatpush1.msra.mxu0 %v85
    %1260 = vmatprep.subr.mxu0 %v88
    %1261 = vmatpush1.msra.mxu0 %v87
    %1262 = vmatprep.subr.mxu0 %v90
    %1263 = vmatpush1.msra.mxu0 %v89
    %1264 = vmatprep.subr.mxu0 %v92
    %1265 = vmatpush1.msra.mxu0 %v91
    %1266 = vmatprep.subr.mxu0 %v94
    %1267 = vmatpush1.msra.mxu0 %v93
    %1268 = vmatprep.subr.mxu0 %v96
    %1269 = vmatpush1.msra.mxu0 %v95
    %1270 = vmatprep.subr.mxu0 %v98
    %1271 = vmatpush1.msra.mxu0 %v97
    %1272 = vmatprep.subr.mxu0 %v100
    %1273 = vmatpush1.msra.mxu0 %v99
    %1274 = vmatprep.subr.mxu0 %v102
    %1275 = vmatpush1.msra.mxu0 %v101
    %1276 = vmatprep.subr.mxu0 %v104
    %1277 = vmatpush1.msra.mxu0 %v103
    %1278 = vmatprep.subr.mxu0 %v106
    %1279 = vmatpush1.msra.mxu0 %v105
    %1280 = vmatprep.subr.mxu0 0.0
    %1281 = vmatpush1.msra.mxu0 0.0
    %1282 = vmatprep.subr.mxu0 0.0
    %1283 = vmatpush1.msra.mxu0 0.0
    %1284 = vmatprep.subr.mxu0 0.0
    %1285 = vmatpush1.msra.mxu0 0.0
    %1286 = vmatprep.subr.mxu0 0.0
    %1287 = vmatpush1.msra.mxu0 0.0
    %1288 = vmatprep.subr.mxu0 0.0
    %1289 = vmatpush1.msra.mxu0 0.0
    %1290 = vmatprep.subr.mxu0 0.0
    %1291 = vmatpush1.msra.mxu0 0.0
    %1292 = vmatprep.subr.mxu0 0.0
    %1293 = vmatpush1.msra.mxu0 0.0
    %1294 = vmatprep.subr.mxu0 0.0
    %1295 = vmatpush1.msra.mxu0 0.0
    %1296 = vmatprep.subr.mxu0 0.0
    %1297 = vmatpush1.msra.mxu0 0.0
    %1298 = vmatprep.subr.mxu0 0.0
    %1299 = vmatpush1.msra.mxu0 0.0
    %1300 = vmatprep.subr.mxu0 0.0
    %1301 = vmatpush1.msra.mxu0 0.0
    %1302 = vmatprep.subr.mxu0 0.0
    %1303 = vmatpush1.msra.mxu0 0.0
    %1304 = vmatprep.subr.mxu0 0.0
    %1305 = vmatpush1.msra.mxu0 0.0
    %1306 = vmatprep.subr.mxu0 0.0
    %1307 = vmatpush1.msra.mxu0 0.0
    %1308 = vmatprep.subr.mxu0 0.0
    %1309 = vmatpush1.msra.mxu0 0.0
    %1310 = vmatprep.subr.mxu0 0.0
    %1311 = vmatpush1.msra.mxu0 0.0
    %1312 = vmatprep.mubr.f32.mxu0 0.0
    %1313 = vmatmul.mubr.f32.gmra.mrb[0].mxu0 %v1232
    %v1314 = vpop.f32.mrb[0].mxu0
    %v1315 = vadd.f32 0.0, %v1314
    %v1316 = vpop.f32.mrb[0].mxu0
    %v1317 = vadd.f32 0.0, %v1316
    %1318 = vdwg.mxu0
    %v1320 = vsel %vm192, %v1247, 0
    %1322 = vmatprep.subr.mxu0 %v72
    %1323 = vmatpush1.msra.mxu0 %v71
    %1324 = vmatprep.subr.mxu0 %v74
    %1325 = vmatpush1.msra.mxu0 %v73
    %1326 = vmatprep.subr.mxu0 0.0
    %1327 = vmatpush1.msra.mxu0 0.0
    %1328 = vmatprep.subr.mxu0 0.0
    %1329 = vmatpush1.msra.mxu0 0.0
    %1330 = vmatprep.subr.mxu0 0.0
    %1331 = vmatpush1.msra.mxu0 0.0
    %1332 = vmatprep.subr.mxu0 0.0
    %1333 = vmatpush1.msra.mxu0 0.0
    %1334 = vmatprep.subr.mxu0 0.0
    %1335 = vmatpush1.msra.mxu0 0.0
    %1336 = vmatprep.subr.mxu0 0.0
    %1337 = vmatpush1.msra.mxu0 0.0
    %1338 = vmatprep.subr.mxu0 0.0
    %1339 = vmatpush1.msra.mxu0 0.0
    %1340 = vmatprep.subr.mxu0 0.0
    %1341 = vmatpush1.msra.mxu0 0.0
    %1342 = vmatprep.subr.mxu0 0.0
    %1343 = vmatpush1.msra.mxu0 0.0
    %1344 = vmatprep.subr.mxu0 0.0
    %1345 = vmatpush1.msra.mxu0 0.0
    %1346 = vmatprep.subr.mxu0 0.0
    %1347 = vmatpush1.msra.mxu0 0.0
    %1348 = vmatprep.subr.mxu0 0.0
    %1349 = vmatpush1.msra.mxu0 0.0
    %1350 = vmatprep.subr.mxu0 0.0
    %1351 = vmatpush1.msra.mxu0 0.0
    %1352 = vmatprep.subr.mxu0 0.0
    %1353 = vmatpush1.msra.mxu0 0.0
    %1354 = vmatprep.subr.mxu0 0.0
    %1355 = vmatpush1.msra.mxu0 0.0
    %1356 = vmatprep.subr.mxu0 0.0
    %1357 = vmatpush1.msra.mxu0 0.0
    %1358 = vmatprep.subr.mxu0 0.0
    %1359 = vmatpush1.msra.mxu0 0.0
    %1360 = vmatprep.subr.mxu0 0.0
    %1361 = vmatpush1.msra.mxu0 0.0
    %1362 = vmatprep.subr.mxu0 0.0
    %1363 = vmatpush1.msra.mxu0 0.0
    %1364 = vmatprep.subr.mxu0 0.0
    %1365 = vmatpush1.msra.mxu0 0.0
    %1366 = vmatprep.subr.mxu0 0.0
    %1367 = vmatpush1.msra.mxu0 0.0
    %1368 = vmatprep.subr.mxu0 0.0
    %1369 = vmatpush1.msra.mxu0 0.0
    %1370 = vmatprep.subr.mxu0 0.0
    %1371 = vmatpush1.msra.mxu0 0.0
    %1372 = vmatprep.subr.mxu0 0.0
    %1373 = vmatpush1.msra.mxu0 0.0
    %1374 = vmatprep.subr.mxu0 0.0
    %1375 = vmatpush1.msra.mxu0 0.0
    %1376 = vmatprep.subr.mxu0 0.0
    %1377 = vmatpush1.msra.mxu0 0.0
    %1378 = vmatprep.subr.mxu0 0.0
    %1379 = vmatpush1.msra.mxu0 0.0
    %1380 = vmatprep.subr.mxu0 0.0
    %1381 = vmatpush1.msra.mxu0 0.0
    %1382 = vmatprep.subr.mxu0 0.0
    %1383 = vmatpush1.msra.mxu0 0.0
    %1384 = vmatprep.subr.mxu0 0.0
    %1385 = vmatpush1.msra.mxu0 0.0
    %1386 = vmatprep.mubr.f32.mxu0 0.0
    %1387 = vmatmul.mubr.f32.gmra.mrb[0].mxu0 %v1320
    %v1388 = vpop.f32.mrb[0].mxu0
    %v1389 = vadd.f32 %v1315, %v1388
    %v1390 = vpop.f32.mrb[0].mxu0
    %v1391 = vadd.f32 %v1317, %v1390
    %1392 = vdwg.mxu0
    %v1393 = vadd.f32 %v1389, %v112
    %v1394 = vadd.f32 %v1391, %v116
    %1395 = vmax.xlane.f32.xlu0 %v1394
    %v1396 = vpop.xlane.xlu0 %1395
    %v1397 = vsub.f32 %v1394, %v1396
    %v1398 = vmul.f32 %v1397, 1.442695
    %v1399 = vpow.pop %v1398
    %1400 = vadd.xlane.f32.xlu0 %v1399
    %v1401 = vpop.xlane.xlu0 %1400
    %v1402 = vlog2.pop %v1401
    %v1403 = vmul.f32 %v1402, 0.6931472
    %v1404 = vsub.f32 %v1397, %v1403
    %s1405 = scalar_lea.vmem [#allocation9], 56
    %1406 = vst [vmem:[%s1405] sm:$0xff] %v1404
    %1407 = vst [vmem:[#allocation2] sm:$0xff] %v1393
    // Predicated region
    $region38: #{tpu_custom_call.1} parent=1 // pred_check
      %p1408 = pneg %p65
    $region39: #{tpu_custom_call.1} parent=1 // pred_check_branch
      %1410 = sbr.rel (%p1408) target = $region41
    $region40: #{tpu_custom_call.1} parent=1 // pred_region
      %1411 = vst [vmem:[#allocation10] sm:$0xff] %v1393
    $region41: #{tpu_custom_call.1} parent=1 // pred_fallthru
      _
    // Predicated region
    $region42: #{tpu_custom_call.1} parent=1 // pred_check
      _
    $region43: #{tpu_custom_call.1} parent=1 // pred_check_branch
      %1413 = sbr.rel (0) target = $region45
    $region44: #{tpu_custom_call.1} parent=1 // pred_region
      %s1415 = ssub.s32 1024, 1024
      %1416 = vsyncadd [#allocation5], %s1415
      %s1417 = sshll.u32 [#allocation9], 4
      %s1418 = int_to_ptr.vmem [resolvable:$true] %s1417
      %1423 = dma.vmem_to_hbm [thread:$0]  %s1418, 1024, %s5, [#allocation5], 128, 128, 8
    $region45: #{tpu_custom_call.1} parent=1 // pred_fallthru
      _
    // Predicated region
    $region46: #{tpu_custom_call.1} parent=1 // pred_check
      _
    $region47: #{tpu_custom_call.1} parent=1 // pred_check_branch
      %1425 = sbr.rel (0) target = $region49
    $region48: #{tpu_custom_call.1} parent=1 // pred_region
      %s1427 = ssub.s32 128, 128
      %1428 = vsyncadd [#allocation11], %s1427
      %s1430 = sshll.u32 [#allocation10], 4
      %s1431 = int_to_ptr.vmem [resolvable:$true] %s1430
      %1433 = dma.vmem_to_hbm [thread:$0]  %s1431, 128, %s6, [#allocation11]
    $region49: #{tpu_custom_call.1} parent=1 // pred_fallthru
      _
    // Predicated region
    $region50: #{tpu_custom_call.1} parent=1 // pred_check
      _
    $region51: #{tpu_custom_call.1} parent=1 // pred_check_branch
      %1435 = sbr.rel (0) target = $region53
    $region52: #{tpu_custom_call.1} parent=1 // pred_region
      %1436 = dma.done [#allocation5], 1024
    $region53: #{tpu_custom_call.1} parent=1 // pred_fallthru
      _
    // Predicated region
    $region54: #{tpu_custom_call.1} parent=1 // pred_check
      _
    $region55: #{tpu_custom_call.1} parent=1 // pred_check_branch
      %1438 = sbr.rel (0) target = $region57
    $region56: #{tpu_custom_call.1} parent=1 // pred_region
      %1439 = dma.done [#allocation11], 128
    $region57: #{tpu_custom_call.1} parent=1 // pred_fallthru
      _
    %1440 = vsyncpa [#allocation4], 1
    %1441 = vsyncpa [#allocation7], 1
    %1442 = vsyncpa [#allocation5], 1
    %1443 = vsyncpa [#allocation11], 1

</llo_original>
